<compile_context>
chip_gen: v7x
topology: tpu7x:2x2x1
jax: 0.10.0
libtpu: 0.0.40
codegen_flags: <defaults>
</compile_context>

<pallas_src>
import jax
import jax.numpy as jnp
from jax.experimental import pallas as pl
from jax.experimental.pallas import tpu as pltpu

EPS = 1e-5
MXU_DTYPE = jnp.bfloat16          # MXU operand dtype (f32 accumulation everywhere)


# ------------------------------ Pallas kernel -------------------------------- #

def _make_fused_kernel(N, H, W, Cin, Cout, mxu_dtype):
    """Fused conv1(+shortcut) -> BN1 -> ReLU -> conv2 -> BN2 -> add -> ReLU."""
    LIN, LOUT = W * Cin, W * Cout
    inv_m = 1.0 / float(N * H * W)

    def kernel(x_ref, t1_ref, t2_ref, gg_ref, bt_ref, bc_ref, bct_ref,
               o_ref, xpad_ref, h1pad_ref):
        # x_ref  : (N, H, W*Cin)        bf16 lane-dense input rows
        # t1_ref : (3, W*Cin, 2*W*Cout) bf16 conv1 Toeplitz taps + folded 1x1 shortcut
        # t2_ref : (3, W*Cout, W*Cout)  bf16 conv2 Toeplitz taps
        # gg_ref : (2, Cout)            f32  [g1; g2]
        # bt_ref : (3, W*Cout)          f32  [bsc; be1; be2] pre-tiled to lane layout
        # bc_ref : (Cout, W*Cout)       f32  0/1 channel->lane broadcast matrix
        # bct_ref: (W*Cout, Cout)       f32  0/1 lane->channel reduction matrix
        # o_ref  : (N, H, W*Cout)       f32  output rows
        # xpad_ref / h1pad_ref: f32 VMEM halo scratches (vertical conv padding)

        # ---- vertical halo for conv1: zero only the two halo rows, fill interior ----
        xpad_ref[:, 0:1, :] = jnp.zeros((N, 1, LIN), jnp.float32)
        xpad_ref[:, H + 1:H + 2, :] = jnp.zeros((N, 1, LIN), jnp.float32)
        xpad_ref[:, 1:H + 1, :] = x_ref[...].astype(jnp.float32)

        bc = bc_ref[...]
        bct = bct_ref[...]

        # ---- conv1 (3x3, pad 1) + folded 1x1 shortcut: 3 MXU dots, K = W*Cin --------
        acc1 = jnp.zeros((N * H, 2 * LOUT), jnp.float32)
        for ky in range(3):                       # static unroll over the 3 tap rows
            lhs = (xpad_ref[:, ky:ky + H, :]
                   .reshape(N * H, LIN).astype(mxu_dtype))
            acc1 = acc1 + jnp.dot(lhs, t1_ref[ky],
                                  preferred_element_type=jnp.float32)
        y1 = acc1[:, :LOUT]                       # pre-BN conv1 (b1 cancels inside BN1)
        sc = acc1[:, LOUT:] + bt_ref[0:1, :]      # 1x1 shortcut conv + its bias

        # ---- BN1 (training-mode batch stats, centered two-pass variance) + ReLU ----
        ch_sum1 = jnp.dot(jnp.sum(y1, axis=0, keepdims=True), bct,
                          preferred_element_type=jnp.float32)          # (1, Cout)
        mean1 = ch_sum1 * inv_m
        mean1_t = jnp.dot(mean1, bc, preferred_element_type=jnp.float32)
        d1 = y1 - mean1_t
        ch_ss1 = jnp.dot(jnp.sum(d1 * d1, axis=0, keepdims=True), bct,
                         preferred_element_type=jnp.float32)
        var1 = ch_ss1 * inv_m
        scale1 = gg_ref[0:1, :] * jax.lax.rsqrt(var1 + EPS)
        scale1_t = jnp.dot(scale1, bc, preferred_element_type=jnp.float32)
        h1 = jnp.maximum(d1 * scale1_t + bt_ref[1:2, :], 0.0)          # (N*H, W*Cout)

        # ---- vertical halo for conv2 (h1 never leaves VMEM) -------------------------
        h1pad_ref[:, 0:1, :] = jnp.zeros((N, 1, LOUT), jnp.float32)
        h1pad_ref[:, H + 1:H + 2, :] = jnp.zeros((N, 1, LOUT), jnp.float32)
        h1pad_ref[:, 1:H + 1, :] = h1.reshape(N, H, LOUT)

        # ---- conv2 (3x3, pad 1): 3 MXU dots, K = W*Cout -----------------------------
        acc2 = jnp.zeros((N * H, LOUT), jnp.float32)
        for ky in range(3):
            lhs = (h1pad_ref[:, ky:ky + H, :]
                   .reshape(N * H, LOUT).astype(mxu_dtype))
            acc2 = acc2 + jnp.dot(lhs, t2_ref[ky],
                                  preferred_element_type=jnp.float32)

        # ---- BN2 + residual add + ReLU ----------------------------------------------
        ch_sum2 = jnp.dot(jnp.sum(acc2, axis=0, keepdims=True), bct,
                          preferred_element_type=jnp.float32)
        mean2 = ch_sum2 * inv_m
        mean2_t = jnp.dot(mean2, bc, preferred_element_type=jnp.float32)
        d2 = acc2 - mean2_t
        ch_ss2 = jnp.dot(jnp.sum(d2 * d2, axis=0, keepdims=True), bct,
                         preferred_element_type=jnp.float32)
        var2 = ch_ss2 * inv_m
        scale2 = gg_ref[1:2, :] * jax.lax.rsqrt(var2 + EPS)
        scale2_t = jnp.dot(scale2, bc, preferred_element_type=jnp.float32)
        out = jnp.maximum(d2 * scale2_t + bt_ref[2:3, :] + sc, 0.0)
        o_ref[...] = out.reshape(N, H, LOUT)

    return kernel


# --------------------------------- wrapper ----------------------------------- #

def _toeplitz_taps(w_oihw, W):
    """OIHW (Cout, Cin, 3, 3) -> (3, W*Cin, W*Cout) block-Toeplitz per tap row:
    T[ky][a*Cin+ci, w*Cout+co] = w[co, ci, ky, kx] with a = w + kx - 1; the
    out-of-range (a<0 or a>=W) entries are simply absent -> conv zero padding."""
    taps = jnp.transpose(w_oihw, (2, 3, 1, 0))                     # (ky, kx, ci, co)
    Cin, Cout = taps.shape[2], taps.shape[3]
    shift = jnp.stack([jnp.eye(W, W, k=1 - kx, dtype=jnp.float32) for kx in range(3)])
    t = jnp.einsum('xaw,yxcd->yacwd', shift, taps)                 # (ky, a, ci, w, co)
    return t.reshape(3, W * Cin, W * Cout)


def _shortcut_block(wsc, W):
    """1x1 conv OIHW (Cout, Cin, 1, 1) -> (W*Cin, W*Cout) block-diagonal matrix."""
    w = wsc[:, :, 0, 0].T                                          # (Cin, Cout)
    Cin, Cout = w.shape
    t = jnp.einsum('aw,cd->acwd', jnp.eye(W, dtype=jnp.float32), w)
    return t.reshape(W * Cin, W * Cout)


def _vmem_limit_bytes():
    # Per-generation VMEM budget (review: don't hardcode 32 MiB): 128 MiB on v5e/v6e,
    # 64 MiB per TensorCore on v7x.  Leave headroom for Mosaic's own scratch.
    try:
        cap = pltpu.get_tpu_info().vmem_capacity_bytes
    except Exception:
        cap = 64 * 1024 * 1024
    return min(int(cap) * 3 // 4, 100 * 1024 * 1024)


@jax.jit
def common_block_forward(x_nchw, params):
    N, Cin, H, W = x_nchw.shape
    Cout = params["w1"].shape[0]
    f32 = jnp.float32
    LIN, LOUT = W * Cin, W * Cout

    # Activations: lane-dense (N, H, W*Cin) rows, cast to bf16 ONCE.
    # TODO(synk): accept/return NHWC at the API boundary to drop these transposes.
    x_rows = (jnp.transpose(x_nchw, (0, 2, 3, 1))
              .reshape(N, H, LIN).astype(MXU_DTYPE))

    # Block-Toeplitz taps; 1x1 shortcut folded into conv1's center-row block.
    t1 = _toeplitz_taps(params["w1"], W)                           # (3, W*Cin, W*Cout)
    tsc = _shortcut_block(params["wsc"], W)                        # (W*Cin, W*Cout)
    t1 = jnp.concatenate(
        [t1, jnp.stack([jnp.zeros_like(tsc), tsc, jnp.zeros_like(tsc)])],
        axis=-1).astype(MXU_DTYPE)                                 # (3, W*Cin, 2*W*Cout)
    t2 = _toeplitz_taps(params["w2"], W).astype(MXU_DTYPE)         # (3, W*Cout, W*Cout)
    # NOTE: conv biases b1/b2 are intentionally unused -- they cancel inside BatchNorm.

    # Small parameter tables.
    gg = jnp.stack([params["g1"], params["g2"]]).astype(f32)       # (2, Cout)
    bt = jnp.stack([jnp.tile(params["bsc"], W),                    # bsc / be1 / be2
                    jnp.tile(params["be1"], W),                    # pre-tiled to the
                    jnp.tile(params["be2"], W)]).astype(f32)       # (w*Cout+c) layout
    bc = jnp.tile(jnp.eye(Cout, dtype=f32), (1, W))                # (Cout, W*Cout)
    bct = bc.T                                                     # (W*Cout, Cout)

    # Per-generation VMEM budget + fused-path guard.
    vmem_limit = _vmem_limit_bytes()
    fused_bytes = (2 * (N * H * LIN * 2 + 3 * LIN * 2 * LOUT * 2
                        + 3 * LOUT * LOUT * 2 + N * H * LOUT * 4)
                   + N * (H + 2) * (LIN + LOUT) * 4 + (1 << 16))
    if fused_bytes > vmem_limit // 2:
        # TODO(synk): tiled multi-pass pipeline (per-block partial BN stats,
        # 'parallel' batch axis on v7x) for production-sized inputs.
        raise ValueError("input too large for the fused single-launch common_block kernel")

    cost = pl.CostEstimate(
        flops=2 * N * H * (3 * LIN * 2 * LOUT + 3 * LOUT * LOUT),
        transcendentals=2 * Cout,
        bytes_accessed=(N * H * LIN * 2 + 3 * LIN * 2 * LOUT * 2
                        + 3 * LOUT * LOUT * 2 + N * H * LOUT * 4))

    out_rows = pl.pallas_call(
        _make_fused_kernel(N, H, W, Cin, Cout, MXU_DTYPE),
        grid=(1,),
        in_specs=[
            pl.BlockSpec((N, H, LIN), lambda i: (0, 0, 0)),            # x rows (bf16)
            pl.BlockSpec((3, LIN, 2 * LOUT), lambda i: (0, 0, 0)),     # conv1+shortcut
            pl.BlockSpec((3, LOUT, LOUT), lambda i: (0, 0, 0)),        # conv2 taps
            pl.BlockSpec((2, Cout), lambda i: (0, 0)),                 # g1, g2
            pl.BlockSpec((3, LOUT), lambda i: (0, 0)),                 # bsc/be1/be2
            pl.BlockSpec((Cout, LOUT), lambda i: (0, 0)),              # chan->lane 0/1
            pl.BlockSpec((LOUT, Cout), lambda i: (0, 0)),              # lane->chan 0/1
        ],
        out_specs=pl.BlockSpec((N, H, LOUT), lambda i: (0, 0, 0)),
        out_shape=jax.ShapeDtypeStruct((N, H, LOUT), f32),
        scratch_shapes=[pltpu.VMEM((N, H + 2, LIN), f32),
                        pltpu.VMEM((N, H + 2, LOUT), f32)],
        compiler_params=pltpu.CompilerParams(
            dimension_semantics=("arbitrary",),
            vmem_limit_bytes=vmem_limit),
        cost_estimate=cost,
    )(x_rows, t1, t2, gg, bt, bc, bct)

    out = out_rows.reshape(N, H, W, Cout)
    return jnp.transpose(out, (0, 3, 1, 2))        # back to NCHW


# --------------------------- pure-JAX reference ------------------------------ #

@jax.jit
def _reference(x, p):
    def conv(x, w, b, pad):
        y = jax.lax.conv_general_dilated(
            x, w, window_strides=(1, 1), padding=pad,
            dimension_numbers=("NCHW", "OIHW", "NCHW"))
        return y + b.reshape(1, -1, 1, 1)

    def bn(x, g, bt):
        mean = x.mean(axis=(0, 2, 3), keepdims=True)
        var = ((x - mean) ** 2).mean(axis=(0, 2, 3), keepdims=True)
        return ((x - mean) * jax.lax.rsqrt(var + EPS)) * g.reshape(1, -1, 1, 1) \
            + bt.reshape(1, -1, 1, 1)

    h = jax.nn.relu(bn(conv(x, p["w1"], p["b1"], ((1, 1), (1, 1))), p["g1"], p["be1"]))
    h = bn(conv(h, p["w2"], p["b2"], ((1, 1), (1, 1))), p["g2"], p["be2"])
    sc = conv(x, p["wsc"], p["bsc"], ((0, 0), (0, 0)))
    return jax.nn.relu(h + sc)


# ---------------------------------- main -------------------------------------- #

if __name__ == "__main__":
    N, Cin, Cout, H, W = 2, 4, 8, 16, 16

    key = jax.random.PRNGKey(0)
    ks = jax.random.split(key, 11)
    params = {
        "w1":  0.1 * jax.random.normal(ks[0], (Cout, Cin, 3, 3), jnp.float32),
        "b1":  0.1 * jax.random.normal(ks[1], (Cout,), jnp.float32),
        "g1":  1.0 + 0.1 * jax.random.normal(ks[2], (Cout,), jnp.float32),
        "be1": 0.1 * jax.random.normal(ks[3], (Cout,), jnp.float32),
        "w2":  0.1 * jax.random.normal(ks[4], (Cout, Cout, 3, 3), jnp.float32),
        "b2":  0.1 * jax.random.normal(ks[5], (Cout,), jnp.float32),
        "g2":  1.0 + 0.1 * jax.random.normal(ks[6], (Cout,), jnp.float32),
        "be2": 0.1 * jax.random.normal(ks[7], (Cout,), jnp.float32),
        "wsc": 0.1 * jax.random.normal(ks[8], (Cout, Cin, 1, 1), jnp.float32),
        "bsc": 0.1 * jax.random.normal(ks[9], (Cout,), jnp.float32),
    }
    x = jax.random.normal(ks[10], (N, Cin, H, W), jnp.float32)

    out = jax.block_until_ready(common_block_forward(x, params))
    ref = jax.block_until_ready(_reference(x, params))

    assert out.shape == (N, Cout, H, W), out.shape
    err = jnp.max(jnp.abs(out - ref))
    # bf16 MXU operands (f32 accumulation / f32 BN math) vs an f32 XLA reference:
    # typical max-abs error is ~1e-2, so assert with margin.
    assert jnp.allclose(out, ref, atol=5e-2, rtol=5e-2), f"max abs err {err}"

    print("KERNEL_OK")
</pallas_src>

<mosaic_0001>
module attributes {stable_mosaic.version = 11 : i64} {
  func.func @kernel(%arg0: i32, %arg1: memref<2x16x64xbf16, #tpu.memory_space<vmem>>, %arg2: memref<3x64x256xbf16, #tpu.memory_space<vmem>>, %arg3: memref<3x128x128xbf16, #tpu.memory_space<vmem>>, %arg4: memref<2x8xf32, #tpu.memory_space<vmem>>, %arg5: memref<3x128xf32, #tpu.memory_space<vmem>>, %arg6: memref<8x128xf32, #tpu.memory_space<vmem>>, %arg7: memref<128x8xf32, #tpu.memory_space<vmem>>, %arg8: memref<2x16x128xf32, #tpu.memory_space<vmem>>, %arg9: memref<2x18x64xf32, #tpu.memory_space<vmem>>, %arg10: memref<2x18x128xf32, #tpu.memory_space<vmem>>) attributes {dimension_semantics = [#tpu.dimension_semantics<arbitrary>], iteration_bounds = array<i64: 1>, scalar_prefetch = 0 : i64, scratch_operands = 2 : i64, tpu.core_type = #tpu.core_type<tc>, window_params = [{pipeline_mode = #tpu.pipeline_mode<synchronous>, transform_indices = @transform_0, window_bounds = array<i64: 2, 16, 64>}, {pipeline_mode = #tpu.pipeline_mode<synchronous>, transform_indices = @transform_1, window_bounds = array<i64: 3, 64, 256>}, {pipeline_mode = #tpu.pipeline_mode<synchronous>, transform_indices = @transform_2, window_bounds = array<i64: 3, 128, 128>}, {pipeline_mode = #tpu.pipeline_mode<synchronous>, transform_indices = @transform_3, window_bounds = array<i64: 2, 8>}, {pipeline_mode = #tpu.pipeline_mode<synchronous>, transform_indices = @transform_4, window_bounds = array<i64: 3, 128>}, {pipeline_mode = #tpu.pipeline_mode<synchronous>, transform_indices = @transform_5, window_bounds = array<i64: 8, 128>}, {pipeline_mode = #tpu.pipeline_mode<synchronous>, transform_indices = @transform_6, window_bounds = array<i64: 128, 8>}, {pipeline_mode = #tpu.pipeline_mode<synchronous>, transform_indices = @transform_7, window_bounds = array<i64: 2, 16, 128>}]} {
    %cst = arith.constant 0.000000e+00 : f32
    %0 = vector.broadcast %cst : f32 to vector<2x1x64xf32>
    %c0 = arith.constant 0 : index
    %c0_0 = arith.constant 0 : index
    %c0_1 = arith.constant 0 : index
    %1 = vector.load %arg9[%c0, %c0_0, %c0_1] : memref<2x18x64xf32, #tpu.memory_space<vmem>>, vector<2x1x64xf32>
    tpu.vector_store %arg9[%c0, %c0_0, %c0_1], %0 {strides = array<i32>} : memref<2x18x64xf32, #tpu.memory_space<vmem>>, vector<2x1x64xf32>,
    %cst_2 = arith.constant 0.000000e+00 : f32
    %2 = vector.broadcast %cst_2 : f32 to vector<2x1x64xf32>
    %c0_3 = arith.constant 0 : index
    %c17 = arith.constant 17 : index
    %c0_4 = arith.constant 0 : index
    %3 = vector.load %arg9[%c0_3, %c17, %c0_4] : memref<2x18x64xf32, #tpu.memory_space<vmem>>, vector<2x1x64xf32>
    tpu.vector_store %arg9[%c0_3, %c17, %c0_4], %2 {strides = array<i32>} : memref<2x18x64xf32, #tpu.memory_space<vmem>>, vector<2x1x64xf32>,
    %c0_5 = arith.constant 0 : index
    %c0_6 = arith.constant 0 : index
    %c0_7 = arith.constant 0 : index
    %4 = vector.load %arg1[%c0_5, %c0_6, %c0_7] : memref<2x16x64xbf16, #tpu.memory_space<vmem>>, vector<2x16x64xbf16>
    %5 = arith.extf %4 : vector<2x16x64xbf16> to vector<2x16x64xf32>
    %c0_8 = arith.constant 0 : index
    %c1 = arith.constant 1 : index
    %c0_9 = arith.constant 0 : index
    %6 = vector.load %arg9[%c0_8, %c1, %c0_9] : memref<2x18x64xf32, #tpu.memory_space<vmem>>, vector<2x16x64xf32>
    tpu.vector_store %arg9[%c0_8, %c1, %c0_9], %5 {strides = array<i32>} : memref<2x18x64xf32, #tpu.memory_space<vmem>>, vector<2x16x64xf32>,
    %c0_10 = arith.constant 0 : index
    %c0_11 = arith.constant 0 : index
    %7 = vector.load %arg6[%c0_10, %c0_11] : memref<8x128xf32, #tpu.memory_space<vmem>>, vector<8x128xf32>
    %c0_12 = arith.constant 0 : index
    %c0_13 = arith.constant 0 : index
    %8 = vector.load %arg7[%c0_12, %c0_13] : memref<128x8xf32, #tpu.memory_space<vmem>>, vector<128x8xf32>
    %cst_14 = arith.constant 0.000000e+00 : f32
    %9 = vector.broadcast %cst_14 : f32 to vector<32x256xf32>
    %c0_15 = arith.constant 0 : index
    %c0_16 = arith.constant 0 : index
    %c0_17 = arith.constant 0 : index
    %10 = vector.load %arg9[%c0_15, %c0_16, %c0_17] : memref<2x18x64xf32, #tpu.memory_space<vmem>>, vector<2x16x64xf32>
    %11 = vector.shape_cast %10 : vector<2x16x64xf32> to vector<32x64xf32>
    %12 = arith.truncf %11 : vector<32x64xf32> to vector<32x64xbf16>
    %c0_18 = arith.constant 0 : index
    %c0_19 = arith.constant 0 : index
    %c0_20 = arith.constant 0 : index
    %13 = vector.load %arg2[%c0_18, %c0_19, %c0_20] : memref<3x64x256xbf16, #tpu.memory_space<vmem>>, vector<1x64x256xbf16>
    %14 = vector.shape_cast %13 : vector<1x64x256xbf16> to vector<64x256xbf16>
    %cst_21 = arith.constant dense<0.000000e+00> : vector<32x256xf32>
    %15 = tpu.matmul %12, %14, %cst_21 {dimension_numbers = #tpu.dot_dimension_numbers<[1], [0], [0], [1], [0, 0, 1, 1], [], []>} : vector<32x64xbf16>, vector<64x256xbf16>, vector<32x256xf32> -> vector<32x256xf32>
    %16 = arith.addf %9, %15 : vector<32x256xf32>
    %c0_22 = arith.constant 0 : index
    %c1_23 = arith.constant 1 : index
    %c0_24 = arith.constant 0 : index
    %17 = vector.load %arg9[%c0_22, %c1_23, %c0_24] : memref<2x18x64xf32, #tpu.memory_space<vmem>>, vector<2x16x64xf32>
    %18 = vector.shape_cast %17 : vector<2x16x64xf32> to vector<32x64xf32>
    %19 = arith.truncf %18 : vector<32x64xf32> to vector<32x64xbf16>
    %c1_25 = arith.constant 1 : index
    %c0_26 = arith.constant 0 : index
    %c0_27 = arith.constant 0 : index
    %20 = vector.load %arg2[%c1_25, %c0_26, %c0_27] : memref<3x64x256xbf16, #tpu.memory_space<vmem>>, vector<1x64x256xbf16>
    %21 = vector.shape_cast %20 : vector<1x64x256xbf16> to vector<64x256xbf16>
    %cst_28 = arith.constant dense<0.000000e+00> : vector<32x256xf32>
    %22 = tpu.matmul %19, %21, %cst_28 {dimension_numbers = #tpu.dot_dimension_numbers<[1], [0], [0], [1], [0, 0, 1, 1], [], []>} : vector<32x64xbf16>, vector<64x256xbf16>, vector<32x256xf32> -> vector<32x256xf32>
    %23 = arith.addf %16, %22 : vector<32x256xf32>
    %c0_29 = arith.constant 0 : index
    %c2 = arith.constant 2 : index
    %c0_30 = arith.constant 0 : index
    %24 = vector.load %arg9[%c0_29, %c2, %c0_30] : memref<2x18x64xf32, #tpu.memory_space<vmem>>, vector<2x16x64xf32>
    %25 = vector.shape_cast %24 : vector<2x16x64xf32> to vector<32x64xf32>
    %26 = arith.truncf %25 : vector<32x64xf32> to vector<32x64xbf16>
    %c2_31 = arith.constant 2 : index
    %c0_32 = arith.constant 0 : index
    %c0_33 = arith.constant 0 : index
    %27 = vector.load %arg2[%c2_31, %c0_32, %c0_33] : memref<3x64x256xbf16, #tpu.memory_space<vmem>>, vector<1x64x256xbf16>
    %28 = vector.shape_cast %27 : vector<1x64x256xbf16> to vector<64x256xbf16>
    %cst_34 = arith.constant dense<0.000000e+00> : vector<32x256xf32>
    %29 = tpu.matmul %26, %28, %cst_34 {dimension_numbers = #tpu.dot_dimension_numbers<[1], [0], [0], [1], [0, 0, 1, 1], [], []>} : vector<32x64xbf16>, vector<64x256xbf16>, vector<32x256xf32> -> vector<32x256xf32>
    %30 = arith.addf %23, %29 : vector<32x256xf32>
    %31 = vector.extract_strided_slice %30 {offsets = [0, 0], sizes = [32, 128], strides = [1, 1]} : vector<32x256xf32> to vector<32x128xf32>
    %32 = vector.extract_strided_slice %30 {offsets = [0, 128], sizes = [32, 128], strides = [1, 1]} : vector<32x256xf32> to vector<32x128xf32>
    %c0_35 = arith.constant 0 : index
    %c0_36 = arith.constant 0 : index
    %33 = vector.load %arg5[%c0_35, %c0_36] : memref<3x128xf32, #tpu.memory_space<vmem>>, vector<1x128xf32>
    %34 = vector.broadcast %33 : vector<1x128xf32> to vector<32x128xf32>
    %35 = arith.addf %32, %34 : vector<32x128xf32>
    %cst_37 = arith.constant dense<0.000000e+00> : vector<128xf32>
    %36 = vector.multi_reduction <add>, %31, %cst_37 [0] : vector<32x128xf32> to vector<128xf32>
    %37 = vector.shape_cast %36 : vector<128xf32> to vector<1x128xf32>
    %cst_38 = arith.constant dense<0.000000e+00> : vector<1x8xf32>
    %38 = tpu.matmul %37, %8, %cst_38 {dimension_numbers = #tpu.dot_dimension_numbers<[1], [0], [0], [1], [0, 0, 1, 1], [], []>} : vector<1x128xf32>, vector<128x8xf32>, vector<1x8xf32> -> vector<1x8xf32>
    %cst_39 = arith.constant 0.001953125 : f32
    %39 = vector.broadcast %cst_39 : f32 to vector<1x8xf32>
    %40 = arith.mulf %38, %39 : vector<1x8xf32>
    %cst_40 = arith.constant dense<0.000000e+00> : vector<1x128xf32>
    %41 = tpu.matmul %40, %7, %cst_40 {dimension_numbers = #tpu.dot_dimension_numbers<[1], [0], [0], [1], [0, 0, 1, 1], [], []>} : vector<1x8xf32>, vector<8x128xf32>, vector<1x128xf32> -> vector<1x128xf32>
    %42 = vector.broadcast %41 : vector<1x128xf32> to vector<32x128xf32>
    %43 = arith.subf %31, %42 : vector<32x128xf32>
    %44 = arith.mulf %43, %43 : vector<32x128xf32>
    %cst_41 = arith.constant dense<0.000000e+00> : vector<128xf32>
    %45 = vector.multi_reduction <add>, %44, %cst_41 [0] : vector<32x128xf32> to vector<128xf32>
    %46 = vector.shape_cast %45 : vector<128xf32> to vector<1x128xf32>
    %cst_42 = arith.constant dense<0.000000e+00> : vector<1x8xf32>
    %47 = tpu.matmul %46, %8, %cst_42 {dimension_numbers = #tpu.dot_dimension_numbers<[1], [0], [0], [1], [0, 0, 1, 1], [], []>} : vector<1x128xf32>, vector<128x8xf32>, vector<1x8xf32> -> vector<1x8xf32>
    %cst_43 = arith.constant 0.001953125 : f32
    %48 = vector.broadcast %cst_43 : f32 to vector<1x8xf32>
    %49 = arith.mulf %47, %48 : vector<1x8xf32>
    %c0_44 = arith.constant 0 : index
    %c0_45 = arith.constant 0 : index
    %50 = vector.load %arg4[%c0_44, %c0_45] : memref<2x8xf32, #tpu.memory_space<vmem>>, vector<1x8xf32>
    %cst_46 = arith.constant 9.99999974E-6 : f32
    %51 = vector.broadcast %cst_46 : f32 to vector<1x8xf32>
    %52 = arith.addf %49, %51 : vector<1x8xf32>
    %53 = math.rsqrt %52 : vector<1x8xf32>
    %54 = arith.mulf %50, %53 : vector<1x8xf32>
    %cst_47 = arith.constant dense<0.000000e+00> : vector<1x128xf32>
    %55 = tpu.matmul %54, %7, %cst_47 {dimension_numbers = #tpu.dot_dimension_numbers<[1], [0], [0], [1], [0, 0, 1, 1], [], []>} : vector<1x8xf32>, vector<8x128xf32>, vector<1x128xf32> -> vector<1x128xf32>
    %56 = vector.broadcast %55 : vector<1x128xf32> to vector<32x128xf32>
    %57 = arith.mulf %43, %56 : vector<32x128xf32>
    %c1_48 = arith.constant 1 : index
    %c0_49 = arith.constant 0 : index
    %58 = vector.load %arg5[%c1_48, %c0_49] : memref<3x128xf32, #tpu.memory_space<vmem>>, vector<1x128xf32>
    %59 = vector.broadcast %58 : vector<1x128xf32> to vector<32x128xf32>
    %60 = arith.addf %57, %59 : vector<32x128xf32>
    %cst_50 = arith.constant 0.000000e+00 : f32
    %61 = vector.broadcast %cst_50 : f32 to vector<32x128xf32>
    %62 = arith.maximumf %60, %61 : vector<32x128xf32>
    %cst_51 = arith.constant 0.000000e+00 : f32
    %63 = vector.broadcast %cst_51 : f32 to vector<2x1x128xf32>
    %c0_52 = arith.constant 0 : index
    %c0_53 = arith.constant 0 : index
    %c0_54 = arith.constant 0 : index
    %64 = vector.load %arg10[%c0_52, %c0_53, %c0_54] : memref<2x18x128xf32, #tpu.memory_space<vmem>>, vector<2x1x128xf32>
    tpu.vector_store %arg10[%c0_52, %c0_53, %c0_54], %63 {strides = array<i32>} : memref<2x18x128xf32, #tpu.memory_space<vmem>>, vector<2x1x128xf32>,
    %cst_55 = arith.constant 0.000000e+00 : f32
    %65 = vector.broadcast %cst_55 : f32 to vector<2x1x128xf32>
    %c0_56 = arith.constant 0 : index
    %c17_57 = arith.constant 17 : index
    %c0_58 = arith.constant 0 : index
    %66 = vector.load %arg10[%c0_56, %c17_57, %c0_58] : memref<2x18x128xf32, #tpu.memory_space<vmem>>, vector<2x1x128xf32>
    tpu.vector_store %arg10[%c0_56, %c17_57, %c0_58], %65 {strides = array<i32>} : memref<2x18x128xf32, #tpu.memory_space<vmem>>, vector<2x1x128xf32>,
    %67 = vector.shape_cast %62 : vector<32x128xf32> to vector<2x16x128xf32>
    %c0_59 = arith.constant 0 : index
    %c1_60 = arith.constant 1 : index
    %c0_61 = arith.constant 0 : index
    %68 = vector.load %arg10[%c0_59, %c1_60, %c0_61] : memref<2x18x128xf32, #tpu.memory_space<vmem>>, vector<2x16x128xf32>
    tpu.vector_store %arg10[%c0_59, %c1_60, %c0_61], %67 {strides = array<i32>} : memref<2x18x128xf32, #tpu.memory_space<vmem>>, vector<2x16x128xf32>,
    %cst_62 = arith.constant 0.000000e+00 : f32
    %69 = vector.broadcast %cst_62 : f32 to vector<32x128xf32>
    %c0_63 = arith.constant 0 : index
    %c0_64 = arith.constant 0 : index
    %c0_65 = arith.constant 0 : index
    %70 = vector.load %arg10[%c0_63, %c0_64, %c0_65] : memref<2x18x128xf32, #tpu.memory_space<vmem>>, vector<2x16x128xf32>
    %71 = vector.shape_cast %70 : vector<2x16x128xf32> to vector<32x128xf32>
    %72 = arith.truncf %71 : vector<32x128xf32> to vector<32x128xbf16>
    %c0_66 = arith.constant 0 : index
    %c0_67 = arith.constant 0 : index
    %c0_68 = arith.constant 0 : index
    %73 = vector.load %arg3[%c0_66, %c0_67, %c0_68] : memref<3x128x128xbf16, #tpu.memory_space<vmem>>, vector<1x128x128xbf16>
    %74 = vector.shape_cast %73 : vector<1x128x128xbf16> to vector<128x128xbf16>
    %cst_69 = arith.constant dense<0.000000e+00> : vector<32x128xf32>
    %75 = tpu.matmul %72, %74, %cst_69 {dimension_numbers = #tpu.dot_dimension_numbers<[1], [0], [0], [1], [0, 0, 1, 1], [], []>} : vector<32x128xbf16>, vector<128x128xbf16>, vector<32x128xf32> -> vector<32x128xf32>
    %76 = arith.addf %69, %75 : vector<32x128xf32>
    %c0_70 = arith.constant 0 : index
    %c1_71 = arith.constant 1 : index
    %c0_72 = arith.constant 0 : index
    %77 = vector.load %arg10[%c0_70, %c1_71, %c0_72] : memref<2x18x128xf32, #tpu.memory_space<vmem>>, vector<2x16x128xf32>
    %78 = vector.shape_cast %77 : vector<2x16x128xf32> to vector<32x128xf32>
    %79 = arith.truncf %78 : vector<32x128xf32> to vector<32x128xbf16>
    %c1_73 = arith.constant 1 : index
    %c0_74 = arith.constant 0 : index
    %c0_75 = arith.constant 0 : index
    %80 = vector.load %arg3[%c1_73, %c0_74, %c0_75] : memref<3x128x128xbf16, #tpu.memory_space<vmem>>, vector<1x128x128xbf16>
    %81 = vector.shape_cast %80 : vector<1x128x128xbf16> to vector<128x128xbf16>
    %cst_76 = arith.constant dense<0.000000e+00> : vector<32x128xf32>
    %82 = tpu.matmul %79, %81, %cst_76 {dimension_numbers = #tpu.dot_dimension_numbers<[1], [0], [0], [1], [0, 0, 1, 1], [], []>} : vector<32x128xbf16>, vector<128x128xbf16>, vector<32x128xf32> -> vector<32x128xf32>
    %83 = arith.addf %76, %82 : vector<32x128xf32>
    %c0_77 = arith.constant 0 : index
    %c2_78 = arith.constant 2 : index
    %c0_79 = arith.constant 0 : index
    %84 = vector.load %arg10[%c0_77, %c2_78, %c0_79] : memref<2x18x128xf32, #tpu.memory_space<vmem>>, vector<2x16x128xf32>
    %85 = vector.shape_cast %84 : vector<2x16x128xf32> to vector<32x128xf32>
    %86 = arith.truncf %85 : vector<32x128xf32> to vector<32x128xbf16>
    %c2_80 = arith.constant 2 : index
    %c0_81 = arith.constant 0 : index
    %c0_82 = arith.constant 0 : index
    %87 = vector.load %arg3[%c2_80, %c0_81, %c0_82] : memref<3x128x128xbf16, #tpu.memory_space<vmem>>, vector<1x128x128xbf16>
    %88 = vector.shape_cast %87 : vector<1x128x128xbf16> to vector<128x128xbf16>
    %cst_83 = arith.constant dense<0.000000e+00> : vector<32x128xf32>
    %89 = tpu.matmul %86, %88, %cst_83 {dimension_numbers = #tpu.dot_dimension_numbers<[1], [0], [0], [1], [0, 0, 1, 1], [], []>} : vector<32x128xbf16>, vector<128x128xbf16>, vector<32x128xf32> -> vector<32x128xf32>
    %90 = arith.addf %83, %89 : vector<32x128xf32>
    %cst_84 = arith.constant dense<0.000000e+00> : vector<128xf32>
    %91 = vector.multi_reduction <add>, %90, %cst_84 [0] : vector<32x128xf32> to vector<128xf32>
    %92 = vector.shape_cast %91 : vector<128xf32> to vector<1x128xf32>
    %cst_85 = arith.constant dense<0.000000e+00> : vector<1x8xf32>
    %93 = tpu.matmul %92, %8, %cst_85 {dimension_numbers = #tpu.dot_dimension_numbers<[1], [0], [0], [1], [0, 0, 1, 1], [], []>} : vector<1x128xf32>, vector<128x8xf32>, vector<1x8xf32> -> vector<1x8xf32>
    %cst_86 = arith.constant 0.001953125 : f32
    %94 = vector.broadcast %cst_86 : f32 to vector<1x8xf32>
    %95 = arith.mulf %93, %94 : vector<1x8xf32>
    %cst_87 = arith.constant dense<0.000000e+00> : vector<1x128xf32>
    %96 = tpu.matmul %95, %7, %cst_87 {dimension_numbers = #tpu.dot_dimension_numbers<[1], [0], [0], [1], [0, 0, 1, 1], [], []>} : vector<1x8xf32>, vector<8x128xf32>, vector<1x128xf32> -> vector<1x128xf32>
    %97 = vector.broadcast %96 : vector<1x128xf32> to vector<32x128xf32>
    %98 = arith.subf %90, %97 : vector<32x128xf32>
    %99 = arith.mulf %98, %98 : vector<32x128xf32>
    %cst_88 = arith.constant dense<0.000000e+00> : vector<128xf32>
    %100 = vector.multi_reduction <add>, %99, %cst_88 [0] : vector<32x128xf32> to vector<128xf32>
    %101 = vector.shape_cast %100 : vector<128xf32> to vector<1x128xf32>
    %cst_89 = arith.constant dense<0.000000e+00> : vector<1x8xf32>
    %102 = tpu.matmul %101, %8, %cst_89 {dimension_numbers = #tpu.dot_dimension_numbers<[1], [0], [0], [1], [0, 0, 1, 1], [], []>} : vector<1x128xf32>, vector<128x8xf32>, vector<1x8xf32> -> vector<1x8xf32>
    %cst_90 = arith.constant 0.001953125 : f32
    %103 = vector.broadcast %cst_90 : f32 to vector<1x8xf32>
    %104 = arith.mulf %102, %103 : vector<1x8xf32>
    %c1_91 = arith.constant 1 : index
    %c0_92 = arith.constant 0 : index
    %105 = vector.load %arg4[%c1_91, %c0_92] : memref<2x8xf32, #tpu.memory_space<vmem>>, vector<1x8xf32>
    %cst_93 = arith.constant 9.99999974E-6 : f32
    %106 = vector.broadcast %cst_93 : f32 to vector<1x8xf32>
    %107 = arith.addf %104, %106 : vector<1x8xf32>
    %108 = math.rsqrt %107 : vector<1x8xf32>
    %109 = arith.mulf %105, %108 : vector<1x8xf32>
    %cst_94 = arith.constant dense<0.000000e+00> : vector<1x128xf32>
    %110 = tpu.matmul %109, %7, %cst_94 {dimension_numbers = #tpu.dot_dimension_numbers<[1], [0], [0], [1], [0, 0, 1, 1], [], []>} : vector<1x8xf32>, vector<8x128xf32>, vector<1x128xf32> -> vector<1x128xf32>
    %111 = vector.broadcast %110 : vector<1x128xf32> to vector<32x128xf32>
    %112 = arith.mulf %98, %111 : vector<32x128xf32>
    %c2_95 = arith.constant 2 : index
    %c0_96 = arith.constant 0 : index
    %113 = vector.load %arg5[%c2_95, %c0_96] : memref<3x128xf32, #tpu.memory_space<vmem>>, vector<1x128xf32>
    %114 = vector.broadcast %113 : vector<1x128xf32> to vector<32x128xf32>
    %115 = arith.addf %112, %114 : vector<32x128xf32>
    %116 = arith.addf %115, %35 : vector<32x128xf32>
    %cst_97 = arith.constant 0.000000e+00 : f32
    %117 = vector.broadcast %cst_97 : f32 to vector<32x128xf32>
    %118 = arith.maximumf %116, %117 : vector<32x128xf32>
    %119 = vector.shape_cast %118 : vector<32x128xf32> to vector<2x16x128xf32>
    %c0_98 = arith.constant 0 : index
    %c0_99 = arith.constant 0 : index
    %c0_100 = arith.constant 0 : index
    %120 = vector.load %arg8[%c0_98, %c0_99, %c0_100] : memref<2x16x128xf32, #tpu.memory_space<vmem>>, vector<2x16x128xf32>
    tpu.vector_store %arg8[%c0_98, %c0_99, %c0_100], %119 {strides = array<i32>} : memref<2x16x128xf32, #tpu.memory_space<vmem>>, vector<2x16x128xf32>,
    return
  }
  func.func @transform_0(%arg0: i32) -> (i32, i32, i32) {
    %c0_i32 = arith.constant 0 : i32
    %c0_i32_0 = arith.constant 0 : i32
    %c0_i32_1 = arith.constant 0 : i32
    %c0_i32_2 = arith.constant 0 : i32
    return %c0_i32, %c0_i32_0, %c0_i32_1 : i32, i32, i32
  }
  func.func @transform_1(%arg0: i32) -> (i32, i32, i32) {
    %c0_i32 = arith.constant 0 : i32
    %c0_i32_0 = arith.constant 0 : i32
    %c0_i32_1 = arith.constant 0 : i32
    %c0_i32_2 = arith.constant 0 : i32
    return %c0_i32, %c0_i32_0, %c0_i32_1 : i32, i32, i32
  }
  func.func @transform_2(%arg0: i32) -> (i32, i32, i32) {
    %c0_i32 = arith.constant 0 : i32
    %c0_i32_0 = arith.constant 0 : i32
    %c0_i32_1 = arith.constant 0 : i32
    %c0_i32_2 = arith.constant 0 : i32
    return %c0_i32, %c0_i32_0, %c0_i32_1 : i32, i32, i32
  }
  func.func @transform_3(%arg0: i32) -> (i32, i32) {
    %c0_i32 = arith.constant 0 : i32
    %c0_i32_0 = arith.constant 0 : i32
    %c0_i32_1 = arith.constant 0 : i32
    return %c0_i32, %c0_i32_0 : i32, i32
  }
  func.func @transform_4(%arg0: i32) -> (i32, i32) {
    %c0_i32 = arith.constant 0 : i32
    %c0_i32_0 = arith.constant 0 : i32
    %c0_i32_1 = arith.constant 0 : i32
    return %c0_i32, %c0_i32_0 : i32, i32
  }
  func.func @transform_5(%arg0: i32) -> (i32, i32) {
    %c0_i32 = arith.constant 0 : i32
    %c0_i32_0 = arith.constant 0 : i32
    %c0_i32_1 = arith.constant 0 : i32
    return %c0_i32, %c0_i32_0 : i32, i32
  }
  func.func @transform_6(%arg0: i32) -> (i32, i32) {
    %c0_i32 = arith.constant 0 : i32
    %c0_i32_0 = arith.constant 0 : i32
    %c0_i32_1 = arith.constant 0 : i32
    return %c0_i32, %c0_i32_0 : i32, i32
  }
  func.func @transform_7(%arg0: i32) -> (i32, i32, i32) {
    %c0_i32 = arith.constant 0 : i32
    %c0_i32_0 = arith.constant 0 : i32
    %c0_i32_1 = arith.constant 0 : i32
    %c0_i32_2 = arith.constant 0 : i32
    return %c0_i32, %c0_i32_0, %c0_i32_1 : i32, i32, i32
  }
}

</mosaic_0001>

<llo_original>
// kernel: tile.23
$region0: #{tile.23}
  #allocation0 [shape = 's32[1]{0}', space=sflag, size = 0x4, scoped, tag = 'scoped memory for tile.23']
  %s0 = inlined_call_operand.vmem [shape: f32[8], index: 0, kind: input, shape index: {}]
  %s1 = inlined_call_operand.vmem [shape: f32[16,8], index: 1, kind: output, shape index: {}]
  // Predicated region
  $region2: #{tile.23} parent=0 // pred_check
    _
  $region3: #{tile.23} parent=0 // pred_check_branch
    %3 = sbr.rel (0) target = $region5
  $region4: #{tile.23} parent=0 // pred_region
    _
  $region5: #{tile.23} parent=0 // pred_fallthru
    _
  %v4 = vld [vmem:[%s0] ss:$0 sm:$0xff]
  %5 = vst [vmem:[%s1] sm:$0xff] %v4
  %s6 = scalar_lea.vmem %s1, 8
  %7 = vst [vmem:[%s6] sm:$0xff] %v4

// kernel: tile.32
$region0: #{tile.32}
  %s0 = inlined_call_operand.vmem [shape: f32[16,8], index: 0, kind: input, shape index: {}]
  %s1 = inlined_call_operand.vmem [shape: f32[1,128], index: 1, kind: output, shape index: {}]
  $region1: #{tile.32} parent=0
    #allocation0 [shape = 'u8[4096]{0}', space=vmem, size = 0x1000, scoped, tag = 'scoped mem for output reshape']
    %v2 = vld [vmem:[%s0] sm:$0x1]
    %vm3 = vcmask 64512
    %4 = vst.msk [vmem:[#allocation0] sm:$0x1] %vm3, %v2
    %s5 = scalar_lea.vmem %s0, 15
    %v6 = vld [vmem:[%s5] sm:$0x1]
    %7 = vrot.lane.b32.xlu0 %v6, 120
    %v8 = vpop.permute.xlu0 %7
    %vm9 = vcmask 1048512
    %10 = vst.msk [vmem:[#allocation0] sm:$0x1] %vm9, %v8
    %s11 = scalar_lea.vmem %s0, 14
    %v12 = vld [vmem:[%s11] sm:$0x1]
    %13 = vrot.lane.b32.xlu0 %v12, 112
    %v14 = vpop.permute.xlu0 %13
    %vm15 = vcmask 982912
    %16 = vst.msk [vmem:[#allocation0] sm:$0x1] %vm15, %v14
    %s17 = scalar_lea.vmem %s0, 13
    %v18 = vld [vmem:[%s17] sm:$0x1]
    %19 = vrot.lane.b32.xlu0 %v18, 104
    %v20 = vpop.permute.xlu0 %19
    %vm21 = vcmask 917312
    %22 = vst.msk [vmem:[#allocation0] sm:$0x1] %vm21, %v20
    %s23 = scalar_lea.vmem %s0, 12
    %v24 = vld [vmem:[%s23] sm:$0x1]
    %25 = vrot.lane.b32.xlu0 %v24, 96
    %v26 = vpop.permute.xlu0 %25
    %vm27 = vcmask 851712
    %28 = vst.msk [vmem:[#allocation0] sm:$0x1] %vm27, %v26
    %s29 = scalar_lea.vmem %s0, 11
    %v30 = vld [vmem:[%s29] sm:$0x1]
    %31 = vrot.lane.b32.xlu0 %v30, 88
    %v32 = vpop.permute.xlu0 %31
    %vm33 = vcmask 786112
    %34 = vst.msk [vmem:[#allocation0] sm:$0x1] %vm33, %v32
    %s35 = scalar_lea.vmem %s0, 10
    %v36 = vld [vmem:[%s35] sm:$0x1]
    %37 = vrot.lane.b32.xlu0 %v36, 80
    %v38 = vpop.permute.xlu0 %37
    %vm39 = vcmask 720512
    %40 = vst.msk [vmem:[#allocation0] sm:$0x1] %vm39, %v38
    %s41 = scalar_lea.vmem %s0, 9
    %v42 = vld [vmem:[%s41] sm:$0x1]
    %43 = vrot.lane.b32.xlu0 %v42, 72
    %v44 = vpop.permute.xlu0 %43
    %vm45 = vcmask 654912
    %46 = vst.msk [vmem:[#allocation0] sm:$0x1] %vm45, %v44
    %s47 = scalar_lea.vmem %s0, 8
    %v48 = vld [vmem:[%s47] sm:$0x1]
    %49 = vrot.lane.b32.xlu0 %v48, 64
    %v50 = vpop.permute.xlu0 %49
    %vm51 = vcmask 589312
    %52 = vst.msk [vmem:[#allocation0] sm:$0x1] %vm51, %v50
    %s53 = scalar_lea.vmem %s0, 7
    %v54 = vld [vmem:[%s53] sm:$0x1]
    %55 = vrot.lane.b32.xlu0 %v54, 56
    %v56 = vpop.permute.xlu0 %55
    %vm57 = vcmask 523712
    %58 = vst.msk [vmem:[#allocation0] sm:$0x1] %vm57, %v56
    %s59 = scalar_lea.vmem %s0, 6
    %v60 = vld [vmem:[%s59] sm:$0x1]
    %61 = vrot.lane.b32.xlu0 %v60, 48
    %v62 = vpop.permute.xlu0 %61
    %vm63 = vcmask 458112
    %64 = vst.msk [vmem:[#allocation0] sm:$0x1] %vm63, %v62
    %s65 = scalar_lea.vmem %s0, 5
    %v66 = vld [vmem:[%s65] sm:$0x1]
    %67 = vrot.lane.b32.xlu0 %v66, 40
    %v68 = vpop.permute.xlu0 %67
    %vm69 = vcmask 392512
    %70 = vst.msk [vmem:[#allocation0] sm:$0x1] %vm69, %v68
    %s71 = scalar_lea.vmem %s0, 4
    %v72 = vld [vmem:[%s71] sm:$0x1]
    %73 = vrot.lane.b32.xlu0 %v72, 32
    %v74 = vpop.permute.xlu0 %73
    %vm75 = vcmask 326912
    %76 = vst.msk [vmem:[#allocation0] sm:$0x1] %vm75, %v74
    %s77 = scalar_lea.vmem %s0, 3
    %v78 = vld [vmem:[%s77] sm:$0x1]
    %79 = vrot.lane.b32.xlu0 %v78, 24
    %v80 = vpop.permute.xlu0 %79
    %vm81 = vcmask 261312
    %82 = vst.msk [vmem:[#allocation0] sm:$0x1] %vm81, %v80
    %s83 = scalar_lea.vmem %s0, 2
    %v84 = vld [vmem:[%s83] sm:$0x1]
    %85 = vrot.lane.b32.xlu0 %v84, 16
    %v86 = vpop.permute.xlu0 %85
    %vm87 = vcmask 195712
    %88 = vst.msk [vmem:[#allocation0] sm:$0x1] %vm87, %v86
    %s89 = scalar_lea.vmem %s0, 1
    %v90 = vld [vmem:[%s89] sm:$0x1]
    %91 = vrot.lane.b32.xlu0 %v90, 8
    %v92 = vpop.permute.xlu0 %91
    %vm93 = vcmask 130112
    %94 = vst.msk [vmem:[#allocation0] sm:$0x1] %vm93, %v92
    %s96 = sshllo.u32 0, 1
    %v98 = vld [vmem:[#allocation0] sm:%s96]
    %s99 = sshllo.u32 0, 1
    %100 = vst [vmem:[%s1] sm:%s99] %v98

// kernel: common_block_forward.1
$region0: #{common_block_forward.1}
  #allocation0 [shape = 'u32[]', space=smem, size = 0x4, offset = 0x4, fixed_abs, tag = 'smem constant byte address 0x4 - core index']
  #allocation1 [shape = 'u32[144,128]{1,0:T(1,128)}', space=vmem, size = 0x12000, scoped, tag = 'internal scratch']
  #allocation2 [shape = 'f32[2,18,64]{2,1,0:T(8,128)}', space=vmem, size = 0x6000, scoped, tag = 'scratch operand']
  #allocation3 [shape = 'f32[2,18,128]{2,1,0:T(8,128)}', space=vmem, size = 0x6000, scoped, tag = 'scratch operand']
  %s0 = inlined_call_operand.vmem [shape: bf16[2,16,64], index: 0, kind: input, shape index: {}]
  %s1 = inlined_call_operand.vmem [shape: bf16[3,64,256], index: 1, kind: input, shape index: {}]
  %s2 = inlined_call_operand.vmem [shape: bf16[3,128,128], index: 2, kind: input, shape index: {}]
  %s3 = inlined_call_operand.vmem [shape: f32[2,8], index: 3, kind: input, shape index: {}]
  %s4 = inlined_call_operand.vmem [shape: f32[3,128], index: 4, kind: input, shape index: {}]
  %s5 = inlined_call_operand.vmem [shape: f32[8,128], index: 5, kind: input, shape index: {}]
  %s6 = inlined_call_operand.vmem [shape: f32[128,8], index: 6, kind: input, shape index: {}]
  %s7 = inlined_call_operand.vmem [shape: f32[2,16,128], index: 7, kind: output, shape index: {}]
  %s8 = sld [smem:[#allocation0]]
  $region38: #{common_block_forward.1} parent=0
    _
  %s10 = ssub.s32 1, %s8
  %s11 = scalar_select 0, %s10, %s8
  // Predicated region
  $region2: #{common_block_forward.1} parent=0 // pred_check
    _
  $region3: #{common_block_forward.1} parent=0 // pred_check_branch
    %13 = sbr.rel (0) target = $region5
  $region4: #{common_block_forward.1} parent=0 // pred_region
    _
  $region5: #{common_block_forward.1} parent=0 // pred_fallthru
    _
  // Predicated region
  $region6: #{common_block_forward.1} parent=0 // pred_check
    _
  $region7: #{common_block_forward.1} parent=0 // pred_check_branch
    %15 = sbr.rel (0) target = $region9
  $region8: #{common_block_forward.1} parent=0 // pred_region
    _
  $region9: #{common_block_forward.1} parent=0 // pred_fallthru
    _
  // Predicated region
  $region10: #{common_block_forward.1} parent=0 // pred_check
    _
  $region11: #{common_block_forward.1} parent=0 // pred_check_branch
    %17 = sbr.rel (0) target = $region13
  $region12: #{common_block_forward.1} parent=0 // pred_region
    _
  $region13: #{common_block_forward.1} parent=0 // pred_fallthru
    _
  // Predicated region
  $region14: #{common_block_forward.1} parent=0 // pred_check
    _
  $region15: #{common_block_forward.1} parent=0 // pred_check_branch
    %19 = sbr.rel (0) target = $region17
  $region16: #{common_block_forward.1} parent=0 // pred_region
    _
  $region17: #{common_block_forward.1} parent=0 // pred_fallthru
    _
  // Predicated region
  $region18: #{common_block_forward.1} parent=0 // pred_check
    _
  $region19: #{common_block_forward.1} parent=0 // pred_check_branch
    %21 = sbr.rel (0) target = $region21
  $region20: #{common_block_forward.1} parent=0 // pred_region
    _
  $region21: #{common_block_forward.1} parent=0 // pred_fallthru
    _
  // Predicated region
  $region22: #{common_block_forward.1} parent=0 // pred_check
    _
  $region23: #{common_block_forward.1} parent=0 // pred_check_branch
    %23 = sbr.rel (0) target = $region25
  $region24: #{common_block_forward.1} parent=0 // pred_region
    _
  $region25: #{common_block_forward.1} parent=0 // pred_fallthru
    _
  // Predicated region
  $region26: #{common_block_forward.1} parent=0 // pred_check
    _
  $region27: #{common_block_forward.1} parent=0 // pred_check_branch
    %25 = sbr.rel (0) target = $region29
  $region28: #{common_block_forward.1} parent=0 // pred_region
    _
  $region29: #{common_block_forward.1} parent=0 // pred_fallthru
    _
  %vm27 = vcmask 516096
  %28 = vst.msk [vmem:[#allocation2] sm:$0x1] %vm27, 0.0
  %29 = vst.msk [vmem:[#allocation2 + $0x18] sm:$0x1] %vm27, 0.0
  %30 = vst.msk [vmem:[#allocation2 + $0x11] sm:$0x1] %vm27, 0.0
  %31 = vst.msk [vmem:[#allocation2 + $0x29] sm:$0x1] %vm27, 0.0
  %v32 = vld [vmem:[%s0] sm:$0xf]
  %v33 = vld [vmem:[%s0 + $0x4] sm:$0xf]
  %v34 = vld [vmem:[%s0 + $0x8] sm:$0xf]
  %v35 = vld [vmem:[%s0 + $0xc] sm:$0xf]
  %v36 = vunpack.c.l.bf16 %v32
  %v37 = vunpack.c.l.bf16 %v33
  %v38 = vunpack.c.l.bf16 %v34
  %v39 = vunpack.c.l.bf16 %v35
  %vm40 = vcmask 523264
  %41 = vst.msk [vmem:[#allocation2 + $0x1] sm:$0xff] %vm40, %v36
  %42 = vst.msk [vmem:[#allocation2 + $0x9] sm:$0xff] %vm40, %v37
  %43 = vst.msk [vmem:[#allocation2 + $0x19] sm:$0xff] %vm40, %v38
  %44 = vst.msk [vmem:[#allocation2 + $0x21] sm:$0xff] %vm40, %v39
  %v45 = vld [vmem:[%s5] sm:$0xff]
  %v46 = vld [vmem:[%s6] sm:$0xff]
  %v47 = vld [vmem:[%s6 + $0x8] sm:$0xff]
  %v48 = vld [vmem:[%s6 + $0x10] sm:$0xff]
  %v49 = vld [vmem:[%s6 + $0x18] sm:$0xff]
  %v50 = vld [vmem:[%s6 + $0x20] sm:$0xff]
  %v51 = vld [vmem:[%s6 + $0x28] sm:$0xff]
  %v52 = vld [vmem:[%s6 + $0x30] sm:$0xff]
  %v53 = vld [vmem:[%s6 + $0x38] sm:$0xff]
  %v54 = vld [vmem:[%s6 + $0x40] sm:$0xff]
  %v55 = vld [vmem:[%s6 + $0x48] sm:$0xff]
  %v56 = vld [vmem:[%s6 + $0x50] sm:$0xff]
  %v57 = vld [vmem:[%s6 + $0x58] sm:$0xff]
  %v58 = vld [vmem:[%s6 + $0x60] sm:$0xff]
  %v59 = vld [vmem:[%s6 + $0x68] sm:$0xff]
  %v60 = vld [vmem:[%s6 + $0x70] sm:$0xff]
  %v61 = vld [vmem:[%s6 + $0x78] sm:$0xff]
  %v62 = vld [vmem:[#allocation2] sm:$0xff]
  %v63 = vld [vmem:[#allocation2 + $0x8] sm:$0xff]
  %v64 = vld [vmem:[#allocation2 + $0x18] sm:$0xff]
  %v65 = vld [vmem:[#allocation2 + $0x20] sm:$0xff]
  %v66 = vpack.c.bf16 %v63, %v62
  %v67 = vpack.c.bf16 %v65, %v64
  %v68 = vld [vmem:[%s1] sm:$0xff]
  %v69 = vld [vmem:[%s1 + $0x8] sm:$0xff]
  %v70 = vld [vmem:[%s1 + $0x10] sm:$0xff]
  %v71 = vld [vmem:[%s1 + $0x18] sm:$0xff]
  %v72 = vld [vmem:[%s1 + $0x20] sm:$0xff]
  %v73 = vld [vmem:[%s1 + $0x28] sm:$0xff]
  %v74 = vld [vmem:[%s1 + $0x30] sm:$0xff]
  %v75 = vld [vmem:[%s1 + $0x38] sm:$0xff]
  %v76 = vld [vmem:[#allocation2 + $0x1] sm:$0xff]
  %v77 = vld [vmem:[#allocation2 + $0x9] sm:$0xff]
  %v78 = vld [vmem:[#allocation2 + $0x19] sm:$0xff]
  %v79 = vld [vmem:[#allocation2 + $0x21] sm:$0xff]
  %v80 = vpack.c.bf16 %v77, %v76
  %v81 = vpack.c.bf16 %v79, %v78
  %s82 = scalar_lea.vmem %s1, 64
  %v83 = vld [vmem:[%s82] sm:$0xff]
  %v84 = vld [vmem:[%s82 + $0x8] sm:$0xff]
  %v85 = vld [vmem:[%s82 + $0x10] sm:$0xff]
  %v86 = vld [vmem:[%s82 + $0x18] sm:$0xff]
  %v87 = vld [vmem:[%s82 + $0x20] sm:$0xff]
  %v88 = vld [vmem:[%s82 + $0x28] sm:$0xff]
  %v89 = vld [vmem:[%s82 + $0x30] sm:$0xff]
  %v90 = vld [vmem:[%s82 + $0x38] sm:$0xff]
  %v99 = vunpack.c.l.b16 %v83
  %v100 = vunpack.c.h.b16 %v83
  %v101 = vunpack.c.l.b16 %v84
  %v102 = vunpack.c.h.b16 %v84
  %v103 = vunpack.c.l.b16 %v85
  %v104 = vunpack.c.h.b16 %v85
  %v105 = vunpack.c.l.b16 %v86
  %v106 = vunpack.c.h.b16 %v86
  %v107 = vunpack.c.l.b16 %v87
  %v108 = vunpack.c.h.b16 %v87
  %v109 = vunpack.c.l.b16 %v88
  %v110 = vunpack.c.h.b16 %v88
  %v111 = vunpack.c.l.b16 %v89
  %v112 = vunpack.c.h.b16 %v89
  %v113 = vunpack.c.l.b16 %v90
  %v114 = vunpack.c.h.b16 %v90
  %v115 = vpack.c.b16 %v101, %v99
  %v116 = vpack.c.b16 %v102, %v100
  %v117 = vpack.c.b16 %v105, %v103
  %v118 = vpack.c.b16 %v106, %v104
  %v119 = vpack.c.b16 %v109, %v107
  %v120 = vpack.c.b16 %v110, %v108
  %v121 = vpack.c.b16 %v113, %v111
  %v122 = vpack.c.b16 %v114, %v112
  %v132 = vsel %vm40, %v80, 0
  %v135 = vsel %vm40, %v81, 0
  %137 = vmatprep.subr.bf16.mxu0 %v116
  %138 = vmatpush1.bf16.msra.mxu0 %v115
  %139 = vmatprep.subr.bf16.mxu0 %v118
  %140 = vmatpush1.bf16.msra.mxu0 %v117
  %141 = vmatprep.subr.bf16.mxu0 %v120
  %142 = vmatpush1.bf16.msra.mxu0 %v119
  %143 = vmatprep.subr.bf16.mxu0 %v122
  %144 = vmatpush1.bf16.msra.mxu0 %v121
  %145 = vmatprep.subr.bf16.mxu0 0
  %146 = vmatpush1.bf16.msra.mxu0 0
  %147 = vmatprep.subr.bf16.mxu0 0
  %148 = vmatpush1.bf16.msra.mxu0 0
  %149 = vmatprep.subr.bf16.mxu0 0
  %150 = vmatpush1.bf16.msra.mxu0 0
  %151 = vmatprep.subr.bf16.mxu0 0
  %152 = vmatpush1.bf16.msra.mxu0 0
  %153 = vmatprep.subr.bf16.mxu0 0
  %154 = vmatpush1.bf16.msra.mxu0 0
  %155 = vmatprep.subr.bf16.mxu0 0
  %156 = vmatpush1.bf16.msra.mxu0 0
  %157 = vmatprep.subr.bf16.mxu0 0
  %158 = vmatpush1.bf16.msra.mxu0 0
  %159 = vmatprep.subr.bf16.mxu0 0
  %160 = vmatpush1.bf16.msra.mxu0 0
  %161 = vmatprep.subr.bf16.mxu0 0
  %162 = vmatpush1.bf16.msra.mxu0 0
  %163 = vmatprep.subr.bf16.mxu0 0
  %164 = vmatpush1.bf16.msra.mxu0 0
  %165 = vmatprep.subr.bf16.mxu0 0
  %166 = vmatpush1.bf16.msra.mxu0 0
  %167 = vmatprep.subr.bf16.mxu0 0
  %168 = vmatpush1.bf16.msra.mxu0 0
  %169 = vmatprep.mubr.bf16.mxu0 0
  %170 = vmatmul.mubr.bf16.gmra.mrb[0].mxu0 %v132
  %v171 = vpop.f32.mrb[0].mxu0
  %v172 = vadd.f32 0.0, %v171
  %v173 = vpop.f32.mrb[0].mxu0
  %v174 = vadd.f32 0.0, %v173
  %v175 = vpop.f32.mrb[0].mxu0
  %v176 = vadd.f32 0.0, %v175
  %v177 = vpop.f32.mrb[0].mxu0
  %v178 = vadd.f32 0.0, %v177
  %179 = vmatprep.mubr.bf16.mxu0 0
  %180 = vmatmul.mubr.bf16.gmra.mrb[0].mxu0 %v135
  %v181 = vpop.f32.mrb[0].mxu0
  %v182 = vadd.f32 0.0, %v181
  %v183 = vpop.f32.mrb[0].mxu0
  %v184 = vadd.f32 0.0, %v183
  %v185 = vpop.f32.mrb[0].mxu0
  %v186 = vadd.f32 0.0, %v185
  %v187 = vpop.f32.mrb[0].mxu0
  %v188 = vadd.f32 0.0, %v187
  %189 = vdwg.mxu0
  %v198 = vunpack.c.l.b16 %v68
  %v199 = vunpack.c.h.b16 %v68
  %v200 = vunpack.c.l.b16 %v69
  %v201 = vunpack.c.h.b16 %v69
  %v202 = vunpack.c.l.b16 %v70
  %v203 = vunpack.c.h.b16 %v70
  %v204 = vunpack.c.l.b16 %v71
  %v205 = vunpack.c.h.b16 %v71
  %v206 = vunpack.c.l.b16 %v72
  %v207 = vunpack.c.h.b16 %v72
  %v208 = vunpack.c.l.b16 %v73
  %v209 = vunpack.c.h.b16 %v73
  %v210 = vunpack.c.l.b16 %v74
  %v211 = vunpack.c.h.b16 %v74
  %v212 = vunpack.c.l.b16 %v75
  %v213 = vunpack.c.h.b16 %v75
  %v214 = vpack.c.b16 %v200, %v198
  %v215 = vpack.c.b16 %v201, %v199
  %v216 = vpack.c.b16 %v204, %v202
  %v217 = vpack.c.b16 %v205, %v203
  %v218 = vpack.c.b16 %v208, %v206
  %v219 = vpack.c.b16 %v209, %v207
  %v220 = vpack.c.b16 %v212, %v210
  %v221 = vpack.c.b16 %v213, %v211
  %v231 = vsel %vm40, %v66, 0
  %v234 = vsel %vm40, %v67, 0
  %236 = vmatprep.subr.bf16.mxu0 %v215
  %237 = vmatpush1.bf16.msra.mxu0 %v214
  %238 = vmatprep.subr.bf16.mxu0 %v217
  %239 = vmatpush1.bf16.msra.mxu0 %v216
  %240 = vmatprep.subr.bf16.mxu0 %v219
  %241 = vmatpush1.bf16.msra.mxu0 %v218
  %242 = vmatprep.subr.bf16.mxu0 %v221
  %243 = vmatpush1.bf16.msra.mxu0 %v220
  %244 = vmatprep.subr.bf16.mxu0 0
  %245 = vmatpush1.bf16.msra.mxu0 0
  %246 = vmatprep.subr.bf16.mxu0 0
  %247 = vmatpush1.bf16.msra.mxu0 0
  %248 = vmatprep.subr.bf16.mxu0 0
  %249 = vmatpush1.bf16.msra.mxu0 0
  %250 = vmatprep.subr.bf16.mxu0 0
  %251 = vmatpush1.bf16.msra.mxu0 0
  %252 = vmatprep.subr.bf16.mxu0 0
  %253 = vmatpush1.bf16.msra.mxu0 0
  %254 = vmatprep.subr.bf16.mxu0 0
  %255 = vmatpush1.bf16.msra.mxu0 0
  %256 = vmatprep.subr.bf16.mxu0 0
  %257 = vmatpush1.bf16.msra.mxu0 0
  %258 = vmatprep.subr.bf16.mxu0 0
  %259 = vmatpush1.bf16.msra.mxu0 0
  %260 = vmatprep.subr.bf16.mxu0 0
  %261 = vmatpush1.bf16.msra.mxu0 0
  %262 = vmatprep.subr.bf16.mxu0 0
  %263 = vmatpush1.bf16.msra.mxu0 0
  %264 = vmatprep.subr.bf16.mxu0 0
  %265 = vmatpush1.bf16.msra.mxu0 0
  %266 = vmatprep.subr.bf16.mxu0 0
  %267 = vmatpush1.bf16.msra.mxu0 0
  %268 = vmatprep.mubr.bf16.mxu0 0
  %269 = vmatmul.mubr.bf16.gmra.mrb[0].mxu0 %v231
  %v270 = vpop.f32.mrb[0].mxu0
  %v271 = vadd.f32 %v172, %v270
  %v272 = vpop.f32.mrb[0].mxu0
  %v273 = vadd.f32 %v174, %v272
  %v274 = vpop.f32.mrb[0].mxu0
  %v275 = vadd.f32 %v176, %v274
  %v276 = vpop.f32.mrb[0].mxu0
  %v277 = vadd.f32 %v178, %v276
  %278 = vmatprep.mubr.bf16.mxu0 0
  %279 = vmatmul.mubr.bf16.gmra.mrb[0].mxu0 %v234
  %v280 = vpop.f32.mrb[0].mxu0
  %v281 = vadd.f32 %v182, %v280
  %v282 = vpop.f32.mrb[0].mxu0
  %v283 = vadd.f32 %v184, %v282
  %v284 = vpop.f32.mrb[0].mxu0
  %v285 = vadd.f32 %v186, %v284
  %v286 = vpop.f32.mrb[0].mxu0
  %v287 = vadd.f32 %v188, %v286
  %288 = vdwg.mxu0
  %v289 = vld [vmem:[#allocation2 + $0x2] sm:$0xff]
  %v290 = vld [vmem:[#allocation2 + $0xa] sm:$0xff]
  %v291 = vld [vmem:[#allocation2 + $0x1a] sm:$0xff]
  %v292 = vld [vmem:[#allocation2 + $0x22] sm:$0xff]
  %v293 = vpack.c.bf16 %v290, %v289
  %v294 = vpack.c.bf16 %v292, %v291
  %s295 = scalar_lea.vmem %s1, 128
  %v296 = vld [vmem:[%s295] sm:$0xff]
  %v297 = vld [vmem:[%s295 + $0x8] sm:$0xff]
  %v298 = vld [vmem:[%s295 + $0x10] sm:$0xff]
  %v299 = vld [vmem:[%s295 + $0x18] sm:$0xff]
  %v300 = vld [vmem:[%s295 + $0x20] sm:$0xff]
  %v301 = vld [vmem:[%s295 + $0x28] sm:$0xff]
  %v302 = vld [vmem:[%s295 + $0x30] sm:$0xff]
  %v303 = vld [vmem:[%s295 + $0x38] sm:$0xff]
  %v312 = vunpack.c.l.b16 %v296
  %v313 = vunpack.c.h.b16 %v296
  %v314 = vunpack.c.l.b16 %v297
  %v315 = vunpack.c.h.b16 %v297
  %v316 = vunpack.c.l.b16 %v298
  %v317 = vunpack.c.h.b16 %v298
  %v318 = vunpack.c.l.b16 %v299
  %v319 = vunpack.c.h.b16 %v299
  %v320 = vunpack.c.l.b16 %v300
  %v321 = vunpack.c.h.b16 %v300
  %v322 = vunpack.c.l.b16 %v301
  %v323 = vunpack.c.h.b16 %v301
  %v324 = vunpack.c.l.b16 %v302
  %v325 = vunpack.c.h.b16 %v302
  %v326 = vunpack.c.l.b16 %v303
  %v327 = vunpack.c.h.b16 %v303
  %v328 = vpack.c.b16 %v314, %v312
  %v329 = vpack.c.b16 %v315, %v313
  %v330 = vpack.c.b16 %v318, %v316
  %v331 = vpack.c.b16 %v319, %v317
  %v332 = vpack.c.b16 %v322, %v320
  %v333 = vpack.c.b16 %v323, %v321
  %v334 = vpack.c.b16 %v326, %v324
  %v335 = vpack.c.b16 %v327, %v325
  %v345 = vsel %vm40, %v293, 0
  %v348 = vsel %vm40, %v294, 0
  %350 = vmatprep.subr.bf16.mxu0 %v329
  %351 = vmatpush1.bf16.msra.mxu0 %v328
  %352 = vmatprep.subr.bf16.mxu0 %v331
  %353 = vmatpush1.bf16.msra.mxu0 %v330
  %354 = vmatprep.subr.bf16.mxu0 %v333
  %355 = vmatpush1.bf16.msra.mxu0 %v332
  %356 = vmatprep.subr.bf16.mxu0 %v335
  %357 = vmatpush1.bf16.msra.mxu0 %v334
  %358 = vmatprep.subr.bf16.mxu0 0
  %359 = vmatpush1.bf16.msra.mxu0 0
  %360 = vmatprep.subr.bf16.mxu0 0
  %361 = vmatpush1.bf16.msra.mxu0 0
  %362 = vmatprep.subr.bf16.mxu0 0
  %363 = vmatpush1.bf16.msra.mxu0 0
  %364 = vmatprep.subr.bf16.mxu0 0
  %365 = vmatpush1.bf16.msra.mxu0 0
  %366 = vmatprep.subr.bf16.mxu0 0
  %367 = vmatpush1.bf16.msra.mxu0 0
  %368 = vmatprep.subr.bf16.mxu0 0
  %369 = vmatpush1.bf16.msra.mxu0 0
  %370 = vmatprep.subr.bf16.mxu0 0
  %371 = vmatpush1.bf16.msra.mxu0 0
  %372 = vmatprep.subr.bf16.mxu0 0
  %373 = vmatpush1.bf16.msra.mxu0 0
  %374 = vmatprep.subr.bf16.mxu0 0
  %375 = vmatpush1.bf16.msra.mxu0 0
  %376 = vmatprep.subr.bf16.mxu0 0
  %377 = vmatpush1.bf16.msra.mxu0 0
  %378 = vmatprep.subr.bf16.mxu0 0
  %379 = vmatpush1.bf16.msra.mxu0 0
  %380 = vmatprep.subr.bf16.mxu0 0
  %381 = vmatpush1.bf16.msra.mxu0 0
  %382 = vmatprep.mubr.bf16.mxu0 0
  %383 = vmatmul.mubr.bf16.gmra.mrb[0].mxu0 %v345
  %v384 = vpop.f32.mrb[0].mxu0
  %v385 = vadd.f32 0.0, %v384
  %v386 = vpop.f32.mrb[0].mxu0
  %v387 = vadd.f32 0.0, %v386
  %v388 = vpop.f32.mrb[0].mxu0
  %v389 = vadd.f32 0.0, %v388
  %v390 = vpop.f32.mrb[0].mxu0
  %v391 = vadd.f32 0.0, %v390
  %392 = vmatprep.mubr.bf16.mxu0 0
  %393 = vmatmul.mubr.bf16.gmra.mrb[0].mxu0 %v348
  %v394 = vpop.f32.mrb[0].mxu0
  %v395 = vadd.f32 0.0, %v394
  %v396 = vpop.f32.mrb[0].mxu0
  %v397 = vadd.f32 0.0, %v396
  %v398 = vpop.f32.mrb[0].mxu0
  %v399 = vadd.f32 0.0, %v398
  %v400 = vpop.f32.mrb[0].mxu0
  %v401 = vadd.f32 0.0, %v400
  %402 = vdwg.mxu0
  %v403 = vadd.f32 %v271, %v385
  %v404 = vadd.f32 %v273, %v387
  %v405 = vadd.f32 %v275, %v389
  %v406 = vadd.f32 %v277, %v391
  %v407 = vadd.f32 %v281, %v395
  %v408 = vadd.f32 %v283, %v397
  %v409 = vadd.f32 %v285, %v399
  %v410 = vadd.f32 %v287, %v401
  %v411 = vld [vmem:[%s4] sm:$0x1]
  %v412 = vlaneseq
  %v413 = vshrl.u32 %v412, 7
  %v414 = vsub.s32 0, %v413
  %v415 = vrot.slane %v411, %v414
  %v416 = vadd.f32 %v404, %v415
  %v417 = vadd.f32 %v406, %v415
  %v418 = vadd.f32 %v408, %v415
  %v419 = vadd.f32 %v410, %v415
  %v420 = vadd.f32 %v403, %v405
  %v421 = vadd.f32 %v420, %v407
  %v422 = vadd.f32 %v421, %v409
  %v423 = vrot.slane %v422, 4
  %v424 = vadd.f32 %v422, %v423
  %v425 = vrot.slane %v424, 2
  %v426 = vadd.f32 %v424, %v425
  %v427 = vrot.slane %v426, 1
  %v428 = vadd.f32 %v426, %v427
  %429 = vmatprep.subr.mxu0 0.0
  %430 = vmatpush1.msra.mxu0 %v46
  %431 = vmatprep.subr.mxu0 0.0
  %432 = vmatpush1.msra.mxu0 %v47
  %433 = vmatprep.subr.mxu0 0.0
  %434 = vmatpush1.msra.mxu0 %v48
  %435 = vmatprep.subr.mxu0 0.0
  %436 = vmatpush1.msra.mxu0 %v49
  %437 = vmatprep.subr.mxu0 0.0
  %438 = vmatpush1.msra.mxu0 %v50
  %439 = vmatprep.subr.mxu0 0.0
  %440 = vmatpush1.msra.mxu0 %v51
  %441 = vmatprep.subr.mxu0 0.0
  %442 = vmatpush1.msra.mxu0 %v52
  %443 = vmatprep.subr.mxu0 0.0
  %444 = vmatpush1.msra.mxu0 %v53
  %445 = vmatprep.subr.mxu0 0.0
  %446 = vmatpush1.msra.mxu0 %v54
  %447 = vmatprep.subr.mxu0 0.0
  %448 = vmatpush1.msra.mxu0 %v55
  %449 = vmatprep.subr.mxu0 0.0
  %450 = vmatpush1.msra.mxu0 %v56
  %451 = vmatprep.subr.mxu0 0.0
  %452 = vmatpush1.msra.mxu0 %v57
  %453 = vmatprep.subr.mxu0 0.0
  %454 = vmatpush1.msra.mxu0 %v58
  %455 = vmatprep.subr.mxu0 0.0
  %456 = vmatpush1.msra.mxu0 %v59
  %457 = vmatprep.subr.mxu0 0.0
  %458 = vmatpush1.msra.mxu0 %v60
  %459 = vmatprep.subr.mxu0 0.0
  %460 = vmatpush1.msra.mxu0 %v61
  %461 = vmatprep.subr.mxu0 0.0
  %462 = vmatpush1.msra.mxu0 0.0
  %463 = vmatprep.subr.mxu0 0.0
  %464 = vmatpush1.msra.mxu0 0.0
  %465 = vmatprep.subr.mxu0 0.0
  %466 = vmatpush1.msra.mxu0 0.0
  %467 = vmatprep.subr.mxu0 0.0
  %468 = vmatpush1.msra.mxu0 0.0
  %469 = vmatprep.subr.mxu0 0.0
  %470 = vmatpush1.msra.mxu0 0.0
  %471 = vmatprep.subr.mxu0 0.0
  %472 = vmatpush1.msra.mxu0 0.0
  %473 = vmatprep.subr.mxu0 0.0
  %474 = vmatpush1.msra.mxu0 0.0
  %475 = vmatprep.subr.mxu0 0.0
  %476 = vmatpush1.msra.mxu0 0.0
  %477 = vmatprep.subr.mxu0 0.0
  %478 = vmatpush1.msra.mxu0 0.0
  %479 = vmatprep.subr.mxu0 0.0
  %480 = vmatpush1.msra.mxu0 0.0
  %481 = vmatprep.subr.mxu0 0.0
  %482 = vmatpush1.msra.mxu0 0.0
  %483 = vmatprep.subr.mxu0 0.0
  %484 = vmatpush1.msra.mxu0 0.0
  %485 = vmatprep.subr.mxu0 0.0
  %486 = vmatpush1.msra.mxu0 0.0
  %487 = vmatprep.subr.mxu0 0.0
  %488 = vmatpush1.msra.mxu0 0.0
  %489 = vmatprep.subr.mxu0 0.0
  %490 = vmatpush1.msra.mxu0 0.0
  %491 = vmatprep.subr.mxu0 0.0
  %492 = vmatpush1.msra.mxu0 0.0
  %493 = vmatprep.mubr.f32.mxu0 0.0
  %494 = vmatmul.mubr.f32.gmra.mrb[0].mxu0 %v428
  %v495 = vpop.f32.mrb[0].mxu0
  %v496 = vadd.f32 0.0, %v495
  %v497 = vpop.f32.mrb[0].mxu0
  %498 = vdwg.mxu0
  %v499 = vmul.f32 %v496, 0.001953125
  %vm500 = vcmask 64512
  %v502 = vsel %vm500, %v499, 0
  %504 = vmatprep.subr.mxu0 0.0
  %505 = vmatpush1.msra.mxu0 %v45
  %506 = vmatprep.subr.mxu0 0.0
  %507 = vmatpush1.msra.mxu0 0.0
  %508 = vmatprep.subr.mxu0 0.0
  %509 = vmatpush1.msra.mxu0 0.0
  %510 = vmatprep.subr.mxu0 0.0
  %511 = vmatpush1.msra.mxu0 0.0
  %512 = vmatprep.subr.mxu0 0.0
  %513 = vmatpush1.msra.mxu0 0.0
  %514 = vmatprep.subr.mxu0 0.0
  %515 = vmatpush1.msra.mxu0 0.0
  %516 = vmatprep.subr.mxu0 0.0
  %517 = vmatpush1.msra.mxu0 0.0
  %518 = vmatprep.subr.mxu0 0.0
  %519 = vmatpush1.msra.mxu0 0.0
  %520 = vmatprep.subr.mxu0 0.0
  %521 = vmatpush1.msra.mxu0 0.0
  %522 = vmatprep.subr.mxu0 0.0
  %523 = vmatpush1.msra.mxu0 0.0
  %524 = vmatprep.subr.mxu0 0.0
  %525 = vmatpush1.msra.mxu0 0.0
  %526 = vmatprep.subr.mxu0 0.0
  %527 = vmatpush1.msra.mxu0 0.0
  %528 = vmatprep.subr.mxu0 0.0
  %529 = vmatpush1.msra.mxu0 0.0
  %530 = vmatprep.subr.mxu0 0.0
  %531 = vmatpush1.msra.mxu0 0.0
  %532 = vmatprep.subr.mxu0 0.0
  %533 = vmatpush1.msra.mxu0 0.0
  %534 = vmatprep.subr.mxu0 0.0
  %535 = vmatpush1.msra.mxu0 0.0
  %536 = vmatprep.subr.mxu0 0.0
  %537 = vmatpush1.msra.mxu0 0.0
  %538 = vmatprep.subr.mxu0 0.0
  %539 = vmatpush1.msra.mxu0 0.0
  %540 = vmatprep.subr.mxu0 0.0
  %541 = vmatpush1.msra.mxu0 0.0
  %542 = vmatprep.subr.mxu0 0.0
  %543 = vmatpush1.msra.mxu0 0.0
  %544 = vmatprep.subr.mxu0 0.0
  %545 = vmatpush1.msra.mxu0 0.0
  %546 = vmatprep.subr.mxu0 0.0
  %547 = vmatpush1.msra.mxu0 0.0
  %548 = vmatprep.subr.mxu0 0.0
  %549 = vmatpush1.msra.mxu0 0.0
  %550 = vmatprep.subr.mxu0 0.0
  %551 = vmatpush1.msra.mxu0 0.0
  %552 = vmatprep.subr.mxu0 0.0
  %553 = vmatpush1.msra.mxu0 0.0
  %554 = vmatprep.subr.mxu0 0.0
  %555 = vmatpush1.msra.mxu0 0.0
  %556 = vmatprep.subr.mxu0 0.0
  %557 = vmatpush1.msra.mxu0 0.0
  %558 = vmatprep.subr.mxu0 0.0
  %559 = vmatpush1.msra.mxu0 0.0
  %560 = vmatprep.subr.mxu0 0.0
  %561 = vmatpush1.msra.mxu0 0.0
  %562 = vmatprep.subr.mxu0 0.0
  %563 = vmatpush1.msra.mxu0 0.0
  %564 = vmatprep.subr.mxu0 0.0
  %565 = vmatpush1.msra.mxu0 0.0
  %566 = vmatprep.subr.mxu0 0.0
  %567 = vmatpush1.msra.mxu0 0.0
  %568 = vmatprep.mubr.f32.mxu0 0.0
  %569 = vmatmul.mubr.f32.gmra.mrb[0].mxu0 %v502
  %v570 = vpop.f32.mrb[0].mxu0
  %v571 = vadd.f32 0.0, %v570
  %v572 = vpop.f32.mrb[0].mxu0
  %573 = vdwg.mxu0
  %v574 = vlaneseq
  %v575 = vshrl.u32 %v574, 7
  %v576 = vsub.s32 0, %v575
  %v577 = vrot.slane %v571, %v576
  %v578 = vsub.f32 %v403, %v577
  %v579 = vsub.f32 %v405, %v577
  %v580 = vsub.f32 %v407, %v577
  %v581 = vsub.f32 %v409, %v577
  %v582 = vmul.f32 %v578, %v578
  %v583 = vmul.f32 %v579, %v579
  %v584 = vmul.f32 %v580, %v580
  %v585 = vmul.f32 %v581, %v581
  %v586 = vadd.f32 %v582, %v583
  %v587 = vadd.f32 %v586, %v584
  %v588 = vadd.f32 %v587, %v585
  %v589 = vrot.slane %v588, 4
  %v590 = vadd.f32 %v588, %v589
  %v591 = vrot.slane %v590, 2
  %v592 = vadd.f32 %v590, %v591
  %v593 = vrot.slane %v592, 1
  %v594 = vadd.f32 %v592, %v593
  %595 = vmatprep.subr.mxu0 0.0
  %596 = vmatpush1.msra.mxu0 %v46
  %597 = vmatprep.subr.mxu0 0.0
  %598 = vmatpush1.msra.mxu0 %v47
  %599 = vmatprep.subr.mxu0 0.0
  %600 = vmatpush1.msra.mxu0 %v48
  %601 = vmatprep.subr.mxu0 0.0
  %602 = vmatpush1.msra.mxu0 %v49
  %603 = vmatprep.subr.mxu0 0.0
  %604 = vmatpush1.msra.mxu0 %v50
  %605 = vmatprep.subr.mxu0 0.0
  %606 = vmatpush1.msra.mxu0 %v51
  %607 = vmatprep.subr.mxu0 0.0
  %608 = vmatpush1.msra.mxu0 %v52
  %609 = vmatprep.subr.mxu0 0.0
  %610 = vmatpush1.msra.mxu0 %v53
  %611 = vmatprep.subr.mxu0 0.0
  %612 = vmatpush1.msra.mxu0 %v54
  %613 = vmatprep.subr.mxu0 0.0
  %614 = vmatpush1.msra.mxu0 %v55
  %615 = vmatprep.subr.mxu0 0.0
  %616 = vmatpush1.msra.mxu0 %v56
  %617 = vmatprep.subr.mxu0 0.0
  %618 = vmatpush1.msra.mxu0 %v57
  %619 = vmatprep.subr.mxu0 0.0
  %620 = vmatpush1.msra.mxu0 %v58
  %621 = vmatprep.subr.mxu0 0.0
  %622 = vmatpush1.msra.mxu0 %v59
  %623 = vmatprep.subr.mxu0 0.0
  %624 = vmatpush1.msra.mxu0 %v60
  %625 = vmatprep.subr.mxu0 0.0
  %626 = vmatpush1.msra.mxu0 %v61
  %627 = vmatprep.subr.mxu0 0.0
  %628 = vmatpush1.msra.mxu0 0.0
  %629 = vmatprep.subr.mxu0 0.0
  %630 = vmatpush1.msra.mxu0 0.0
  %631 = vmatprep.subr.mxu0 0.0
  %632 = vmatpush1.msra.mxu0 0.0
  %633 = vmatprep.subr.mxu0 0.0
  %634 = vmatpush1.msra.mxu0 0.0
  %635 = vmatprep.subr.mxu0 0.0
  %636 = vmatpush1.msra.mxu0 0.0
  %637 = vmatprep.subr.mxu0 0.0
  %638 = vmatpush1.msra.mxu0 0.0
  %639 = vmatprep.subr.mxu0 0.0
  %640 = vmatpush1.msra.mxu0 0.0
  %641 = vmatprep.subr.mxu0 0.0
  %642 = vmatpush1.msra.mxu0 0.0
  %643 = vmatprep.subr.mxu0 0.0
  %644 = vmatpush1.msra.mxu0 0.0
  %645 = vmatprep.subr.mxu0 0.0
  %646 = vmatpush1.msra.mxu0 0.0
  %647 = vmatprep.subr.mxu0 0.0
  %648 = vmatpush1.msra.mxu0 0.0
  %649 = vmatprep.subr.mxu0 0.0
  %650 = vmatpush1.msra.mxu0 0.0
  %651 = vmatprep.subr.mxu0 0.0
  %652 = vmatpush1.msra.mxu0 0.0
  %653 = vmatprep.subr.mxu0 0.0
  %654 = vmatpush1.msra.mxu0 0.0
  %655 = vmatprep.subr.mxu0 0.0
  %656 = vmatpush1.msra.mxu0 0.0
  %657 = vmatprep.subr.mxu0 0.0
  %658 = vmatpush1.msra.mxu0 0.0
  %659 = vmatprep.mubr.f32.mxu0 0.0
  %660 = vmatmul.mubr.f32.gmra.mrb[0].mxu0 %v594
  %v661 = vpop.f32.mrb[0].mxu0
  %v662 = vadd.f32 0.0, %v661
  %v663 = vpop.f32.mrb[0].mxu0
  %664 = vdwg.mxu0
  %v665 = vmul.f32 %v662, 0.001953125
  %v666 = vld [vmem:[%s3] sm:$0x1]
  %v667 = vadd.f32 %v665, 1e-05
  %v668 = vrsqrt.pop %v667
  %v669 = vmul.f32 %v666, %v668
  %v671 = vsel %vm500, %v669, 0
  %673 = vmatprep.subr.mxu0 0.0
  %674 = vmatpush1.msra.mxu0 %v45
  %675 = vmatprep.subr.mxu0 0.0
  %676 = vmatpush1.msra.mxu0 0.0
  %677 = vmatprep.subr.mxu0 0.0
  %678 = vmatpush1.msra.mxu0 0.0
  %679 = vmatprep.subr.mxu0 0.0
  %680 = vmatpush1.msra.mxu0 0.0
  %681 = vmatprep.subr.mxu0 0.0
  %682 = vmatpush1.msra.mxu0 0.0
  %683 = vmatprep.subr.mxu0 0.0
  %684 = vmatpush1.msra.mxu0 0.0
  %685 = vmatprep.subr.mxu0 0.0
  %686 = vmatpush1.msra.mxu0 0.0
  %687 = vmatprep.subr.mxu0 0.0
  %688 = vmatpush1.msra.mxu0 0.0
  %689 = vmatprep.subr.mxu0 0.0
  %690 = vmatpush1.msra.mxu0 0.0
  %691 = vmatprep.subr.mxu0 0.0
  %692 = vmatpush1.msra.mxu0 0.0
  %693 = vmatprep.subr.mxu0 0.0
  %694 = vmatpush1.msra.mxu0 0.0
  %695 = vmatprep.subr.mxu0 0.0
  %696 = vmatpush1.msra.mxu0 0.0
  %697 = vmatprep.subr.mxu0 0.0
  %698 = vmatpush1.msra.mxu0 0.0
  %699 = vmatprep.subr.mxu0 0.0
  %700 = vmatpush1.msra.mxu0 0.0
  %701 = vmatprep.subr.mxu0 0.0
  %702 = vmatpush1.msra.mxu0 0.0
  %703 = vmatprep.subr.mxu0 0.0
  %704 = vmatpush1.msra.mxu0 0.0
  %705 = vmatprep.subr.mxu0 0.0
  %706 = vmatpush1.msra.mxu0 0.0
  %707 = vmatprep.subr.mxu0 0.0
  %708 = vmatpush1.msra.mxu0 0.0
  %709 = vmatprep.subr.mxu0 0.0
  %710 = vmatpush1.msra.mxu0 0.0
  %711 = vmatprep.subr.mxu0 0.0
  %712 = vmatpush1.msra.mxu0 0.0
  %713 = vmatprep.subr.mxu0 0.0
  %714 = vmatpush1.msra.mxu0 0.0
  %715 = vmatprep.subr.mxu0 0.0
  %716 = vmatpush1.msra.mxu0 0.0
  %717 = vmatprep.subr.mxu0 0.0
  %718 = vmatpush1.msra.mxu0 0.0
  %719 = vmatprep.subr.mxu0 0.0
  %720 = vmatpush1.msra.mxu0 0.0
  %721 = vmatprep.subr.mxu0 0.0
  %722 = vmatpush1.msra.mxu0 0.0
  %723 = vmatprep.subr.mxu0 0.0
  %724 = vmatpush1.msra.mxu0 0.0
  %725 = vmatprep.subr.mxu0 0.0
  %726 = vmatpush1.msra.mxu0 0.0
  %727 = vmatprep.subr.mxu0 0.0
  %728 = vmatpush1.msra.mxu0 0.0
  %729 = vmatprep.subr.mxu0 0.0
  %730 = vmatpush1.msra.mxu0 0.0
  %731 = vmatprep.subr.mxu0 0.0
  %732 = vmatpush1.msra.mxu0 0.0
  %733 = vmatprep.subr.mxu0 0.0
  %734 = vmatpush1.msra.mxu0 0.0
  %735 = vmatprep.subr.mxu0 0.0
  %736 = vmatpush1.msra.mxu0 0.0
  %737 = vmatprep.mubr.f32.mxu0 0.0
  %738 = vmatmul.mubr.f32.gmra.mrb[0].mxu0 %v671
  %v739 = vpop.f32.mrb[0].mxu0
  %v740 = vadd.f32 0.0, %v739
  %v741 = vpop.f32.mrb[0].mxu0
  %742 = vdwg.mxu0
  %v743 = vlaneseq
  %v744 = vshrl.u32 %v743, 7
  %v745 = vsub.s32 0, %v744
  %v746 = vrot.slane %v740, %v745
  %v747 = vmul.f32 %v578, %v746
  %v748 = vmul.f32 %v579, %v746
  %v749 = vmul.f32 %v580, %v746
  %v750 = vmul.f32 %v581, %v746
  %v751 = vld [vmem:[%s4 + $0x1] sm:$0x1]
  %v752 = vlaneseq
  %v753 = vshrl.u32 %v752, 7
  %v754 = vsub.s32 0, %v753
  %v755 = vrot.slane %v751, %v754
  %v756 = vadd.f32 %v747, %v755
  %v757 = vadd.f32 %v748, %v755
  %v758 = vadd.f32 %v749, %v755
  %v759 = vadd.f32 %v750, %v755
  %v760 = vmax.f32 %v756, 0.0
  %v761 = vmax.f32 %v757, 0.0
  %v762 = vmax.f32 %v758, 0.0
  %v763 = vmax.f32 %v759, 0.0
  %764 = vst [vmem:[#allocation3] sm:$0x1] 0.0
  %765 = vst [vmem:[#allocation3 + $0x18] sm:$0x1] 0.0
  %766 = vst [vmem:[#allocation3 + $0x11] sm:$0x1] 0.0
  %767 = vst [vmem:[#allocation3 + $0x29] sm:$0x1] 0.0
  %768 = vst [vmem:[#allocation3 + $0x1] sm:$0xff] %v760
  %769 = vst [vmem:[#allocation3 + $0x9] sm:$0xff] %v761
  %770 = vst [vmem:[#allocation3 + $0x19] sm:$0xff] %v762
  %771 = vst [vmem:[#allocation3 + $0x21] sm:$0xff] %v763
  %v772 = vld [vmem:[#allocation3] sm:$0xff]
  %v773 = vld [vmem:[#allocation3 + $0x8] sm:$0xff]
  %v774 = vld [vmem:[#allocation3 + $0x18] sm:$0xff]
  %v775 = vld [vmem:[#allocation3 + $0x20] sm:$0xff]
  %v776 = vpack.c.bf16 %v773, %v772
  %v777 = vpack.c.bf16 %v775, %v774
  %v778 = vld [vmem:[%s2] sm:$0xf]
  %v779 = vld [vmem:[%s2 + $0x4] sm:$0xf]
  %v780 = vld [vmem:[%s2 + $0x8] sm:$0xf]
  %v781 = vld [vmem:[%s2 + $0xc] sm:$0xf]
  %v782 = vld [vmem:[%s2 + $0x10] sm:$0xf]
  %v783 = vld [vmem:[%s2 + $0x14] sm:$0xf]
  %v784 = vld [vmem:[%s2 + $0x18] sm:$0xf]
  %v785 = vld [vmem:[%s2 + $0x1c] sm:$0xf]
  %v786 = vld [vmem:[%s2 + $0x20] sm:$0xf]
  %v787 = vld [vmem:[%s2 + $0x24] sm:$0xf]
  %v788 = vld [vmem:[%s2 + $0x28] sm:$0xf]
  %v789 = vld [vmem:[%s2 + $0x2c] sm:$0xf]
  %v790 = vld [vmem:[%s2 + $0x30] sm:$0xf]
  %v791 = vld [vmem:[%s2 + $0x34] sm:$0xf]
  %v792 = vld [vmem:[%s2 + $0x38] sm:$0xf]
  %v793 = vld [vmem:[%s2 + $0x3c] sm:$0xf]
  %v794 = vld [vmem:[#allocation3 + $0x1] sm:$0xff]
  %v795 = vld [vmem:[#allocation3 + $0x9] sm:$0xff]
  %v796 = vld [vmem:[#allocation3 + $0x19] sm:$0xff]
  %v797 = vld [vmem:[#allocation3 + $0x21] sm:$0xff]
  %v798 = vpack.c.bf16 %v795, %v794
  %v799 = vpack.c.bf16 %v797, %v796
  %s800 = scalar_lea.vmem %s2, 64
  %v801 = vld [vmem:[%s800] sm:$0xf]
  %v802 = vld [vmem:[%s800 + $0x4] sm:$0xf]
  %v803 = vld [vmem:[%s800 + $0x8] sm:$0xf]
  %v804 = vld [vmem:[%s800 + $0xc] sm:$0xf]
  %v805 = vld [vmem:[%s800 + $0x10] sm:$0xf]
  %v806 = vld [vmem:[%s800 + $0x14] sm:$0xf]
  %v807 = vld [vmem:[%s800 + $0x18] sm:$0xf]
  %v808 = vld [vmem:[%s800 + $0x1c] sm:$0xf]
  %v809 = vld [vmem:[%s800 + $0x20] sm:$0xf]
  %v810 = vld [vmem:[%s800 + $0x24] sm:$0xf]
  %v811 = vld [vmem:[%s800 + $0x28] sm:$0xf]
  %v812 = vld [vmem:[%s800 + $0x2c] sm:$0xf]
  %v813 = vld [vmem:[%s800 + $0x30] sm:$0xf]
  %v814 = vld [vmem:[%s800 + $0x34] sm:$0xf]
  %v815 = vld [vmem:[%s800 + $0x38] sm:$0xf]
  %v816 = vld [vmem:[%s800 + $0x3c] sm:$0xf]
  %v833 = vunpack.c.l.b16 %v801
  %v834 = vunpack.c.l.b16 %v802
  %v835 = vunpack.c.l.b16 %v803
  %v836 = vunpack.c.l.b16 %v804
  %v837 = vunpack.c.l.b16 %v805
  %v838 = vunpack.c.l.b16 %v806
  %v839 = vunpack.c.l.b16 %v807
  %v840 = vunpack.c.l.b16 %v808
  %v841 = vunpack.c.l.b16 %v809
  %v842 = vunpack.c.l.b16 %v810
  %v843 = vunpack.c.l.b16 %v811
  %v844 = vunpack.c.l.b16 %v812
  %v845 = vunpack.c.l.b16 %v813
  %v846 = vunpack.c.l.b16 %v814
  %v847 = vunpack.c.l.b16 %v815
  %v848 = vunpack.c.l.b16 %v816
  %v849 = vpack.c.b16 %v834, %v833
  %v850 = vpack.c.b16 %v836, %v835
  %v851 = vpack.c.b16 %v838, %v837
  %v852 = vpack.c.b16 %v840, %v839
  %v853 = vpack.c.b16 %v842, %v841
  %v854 = vpack.c.b16 %v844, %v843
  %v855 = vpack.c.b16 %v846, %v845
  %v856 = vpack.c.b16 %v848, %v847
  %865 = vmatprep.subr.bf16.mxu0 0
  %866 = vmatpush1.bf16.msra.mxu0 %v849
  %867 = vmatprep.subr.bf16.mxu0 0
  %868 = vmatpush1.bf16.msra.mxu0 %v850
  %869 = vmatprep.subr.bf16.mxu0 0
  %870 = vmatpush1.bf16.msra.mxu0 %v851
  %871 = vmatprep.subr.bf16.mxu0 0
  %872 = vmatpush1.bf16.msra.mxu0 %v852
  %873 = vmatprep.subr.bf16.mxu0 0
  %874 = vmatpush1.bf16.msra.mxu0 %v853
  %875 = vmatprep.subr.bf16.mxu0 0
  %876 = vmatpush1.bf16.msra.mxu0 %v854
  %877 = vmatprep.subr.bf16.mxu0 0
  %878 = vmatpush1.bf16.msra.mxu0 %v855
  %879 = vmatprep.subr.bf16.mxu0 0
  %880 = vmatpush1.bf16.msra.mxu0 %v856
  %881 = vmatprep.subr.bf16.mxu0 0
  %882 = vmatpush1.bf16.msra.mxu0 0
  %883 = vmatprep.subr.bf16.mxu0 0
  %884 = vmatpush1.bf16.msra.mxu0 0
  %885 = vmatprep.subr.bf16.mxu0 0
  %886 = vmatpush1.bf16.msra.mxu0 0
  %887 = vmatprep.subr.bf16.mxu0 0
  %888 = vmatpush1.bf16.msra.mxu0 0
  %889 = vmatprep.subr.bf16.mxu0 0
  %890 = vmatpush1.bf16.msra.mxu0 0
  %891 = vmatprep.subr.bf16.mxu0 0
  %892 = vmatpush1.bf16.msra.mxu0 0
  %893 = vmatprep.subr.bf16.mxu0 0
  %894 = vmatpush1.bf16.msra.mxu0 0
  %895 = vmatprep.subr.bf16.mxu0 0
  %896 = vmatpush1.bf16.msra.mxu0 0
  %897 = vmatprep.mubr.bf16.mxu0 0
  %898 = vmatmul.mubr.bf16.gmra.mrb[0].mxu0 %v798
  %v899 = vpop.f32.mrb[0].mxu0
  %v900 = vadd.f32 0.0, %v899
  %v901 = vpop.f32.mrb[0].mxu0
  %v902 = vpop.f32.mrb[0].mxu0
  %v903 = vadd.f32 0.0, %v902
  %v904 = vpop.f32.mrb[0].mxu0
  %905 = vmatprep.mubr.bf16.mxu0 0
  %906 = vmatmul.mubr.bf16.gmra.mrb[0].mxu0 %v799
  %v907 = vpop.f32.mrb[0].mxu0
  %v908 = vadd.f32 0.0, %v907
  %v909 = vpop.f32.mrb[0].mxu0
  %v910 = vpop.f32.mrb[0].mxu0
  %v911 = vadd.f32 0.0, %v910
  %v912 = vpop.f32.mrb[0].mxu0
  %913 = vdwg.mxu0
  %v930 = vunpack.c.l.b16 %v778
  %v931 = vunpack.c.l.b16 %v779
  %v932 = vunpack.c.l.b16 %v780
  %v933 = vunpack.c.l.b16 %v781
  %v934 = vunpack.c.l.b16 %v782
  %v935 = vunpack.c.l.b16 %v783
  %v936 = vunpack.c.l.b16 %v784
  %v937 = vunpack.c.l.b16 %v785
  %v938 = vunpack.c.l.b16 %v786
  %v939 = vunpack.c.l.b16 %v787
  %v940 = vunpack.c.l.b16 %v788
  %v941 = vunpack.c.l.b16 %v789
  %v942 = vunpack.c.l.b16 %v790
  %v943 = vunpack.c.l.b16 %v791
  %v944 = vunpack.c.l.b16 %v792
  %v945 = vunpack.c.l.b16 %v793
  %v946 = vpack.c.b16 %v931, %v930
  %v947 = vpack.c.b16 %v933, %v932
  %v948 = vpack.c.b16 %v935, %v934
  %v949 = vpack.c.b16 %v937, %v936
  %v950 = vpack.c.b16 %v939, %v938
  %v951 = vpack.c.b16 %v941, %v940
  %v952 = vpack.c.b16 %v943, %v942
  %v953 = vpack.c.b16 %v945, %v944
  %962 = vmatprep.subr.bf16.mxu0 0
  %963 = vmatpush1.bf16.msra.mxu0 %v946
  %964 = vmatprep.subr.bf16.mxu0 0
  %965 = vmatpush1.bf16.msra.mxu0 %v947
  %966 = vmatprep.subr.bf16.mxu0 0
  %967 = vmatpush1.bf16.msra.mxu0 %v948
  %968 = vmatprep.subr.bf16.mxu0 0
  %969 = vmatpush1.bf16.msra.mxu0 %v949
  %970 = vmatprep.subr.bf16.mxu0 0
  %971 = vmatpush1.bf16.msra.mxu0 %v950
  %972 = vmatprep.subr.bf16.mxu0 0
  %973 = vmatpush1.bf16.msra.mxu0 %v951
  %974 = vmatprep.subr.bf16.mxu0 0
  %975 = vmatpush1.bf16.msra.mxu0 %v952
  %976 = vmatprep.subr.bf16.mxu0 0
  %977 = vmatpush1.bf16.msra.mxu0 %v953
  %978 = vmatprep.subr.bf16.mxu0 0
  %979 = vmatpush1.bf16.msra.mxu0 0
  %980 = vmatprep.subr.bf16.mxu0 0
  %981 = vmatpush1.bf16.msra.mxu0 0
  %982 = vmatprep.subr.bf16.mxu0 0
  %983 = vmatpush1.bf16.msra.mxu0 0
  %984 = vmatprep.subr.bf16.mxu0 0
  %985 = vmatpush1.bf16.msra.mxu0 0
  %986 = vmatprep.subr.bf16.mxu0 0
  %987 = vmatpush1.bf16.msra.mxu0 0
  %988 = vmatprep.subr.bf16.mxu0 0
  %989 = vmatpush1.bf16.msra.mxu0 0
  %990 = vmatprep.subr.bf16.mxu0 0
  %991 = vmatpush1.bf16.msra.mxu0 0
  %992 = vmatprep.subr.bf16.mxu0 0
  %993 = vmatpush1.bf16.msra.mxu0 0
  %994 = vmatprep.mubr.bf16.mxu0 0
  %995 = vmatmul.mubr.bf16.gmra.mrb[0].mxu0 %v776
  %v996 = vpop.f32.mrb[0].mxu0
  %v997 = vadd.f32 %v900, %v996
  %v998 = vpop.f32.mrb[0].mxu0
  %v999 = vpop.f32.mrb[0].mxu0
  %v1000 = vadd.f32 %v903, %v999
  %v1001 = vpop.f32.mrb[0].mxu0
  %1002 = vmatprep.mubr.bf16.mxu0 0
  %1003 = vmatmul.mubr.bf16.gmra.mrb[0].mxu0 %v777
  %v1004 = vpop.f32.mrb[0].mxu0
  %v1005 = vadd.f32 %v908, %v1004
  %v1006 = vpop.f32.mrb[0].mxu0
  %v1007 = vpop.f32.mrb[0].mxu0
  %v1008 = vadd.f32 %v911, %v1007
  %v1009 = vpop.f32.mrb[0].mxu0
  %1010 = vdwg.mxu0
  %v1011 = vld [vmem:[#allocation3 + $0x2] sm:$0xff]
  %v1012 = vld [vmem:[#allocation3 + $0xa] sm:$0xff]
  %v1013 = vld [vmem:[#allocation3 + $0x1a] sm:$0xff]
  %v1014 = vld [vmem:[#allocation3 + $0x22] sm:$0xff]
  %v1015 = vpack.c.bf16 %v1012, %v1011
  %v1016 = vpack.c.bf16 %v1014, %v1013
  %s1017 = scalar_lea.vmem %s2, 128
  %v1018 = vld [vmem:[%s1017] sm:$0xf]
  %v1019 = vld [vmem:[%s1017 + $0x4] sm:$0xf]
  %v1020 = vld [vmem:[%s1017 + $0x8] sm:$0xf]
  %v1021 = vld [vmem:[%s1017 + $0xc] sm:$0xf]
  %v1022 = vld [vmem:[%s1017 + $0x10] sm:$0xf]
  %v1023 = vld [vmem:[%s1017 + $0x14] sm:$0xf]
  %v1024 = vld [vmem:[%s1017 + $0x18] sm:$0xf]
  %v1025 = vld [vmem:[%s1017 + $0x1c] sm:$0xf]
  %v1026 = vld [vmem:[%s1017 + $0x20] sm:$0xf]
  %v1027 = vld [vmem:[%s1017 + $0x24] sm:$0xf]
  %v1028 = vld [vmem:[%s1017 + $0x28] sm:$0xf]
  %v1029 = vld [vmem:[%s1017 + $0x2c] sm:$0xf]
  %v1030 = vld [vmem:[%s1017 + $0x30] sm:$0xf]
  %v1031 = vld [vmem:[%s1017 + $0x34] sm:$0xf]
  %v1032 = vld [vmem:[%s1017 + $0x38] sm:$0xf]
  %v1033 = vld [vmem:[%s1017 + $0x3c] sm:$0xf]
  %v1050 = vunpack.c.l.b16 %v1018
  %v1051 = vunpack.c.l.b16 %v1019
  %v1052 = vunpack.c.l.b16 %v1020
  %v1053 = vunpack.c.l.b16 %v1021
  %v1054 = vunpack.c.l.b16 %v1022
  %v1055 = vunpack.c.l.b16 %v1023
  %v1056 = vunpack.c.l.b16 %v1024
  %v1057 = vunpack.c.l.b16 %v1025
  %v1058 = vunpack.c.l.b16 %v1026
  %v1059 = vunpack.c.l.b16 %v1027
  %v1060 = vunpack.c.l.b16 %v1028
  %v1061 = vunpack.c.l.b16 %v1029
  %v1062 = vunpack.c.l.b16 %v1030
  %v1063 = vunpack.c.l.b16 %v1031
  %v1064 = vunpack.c.l.b16 %v1032
  %v1065 = vunpack.c.l.b16 %v1033
  %v1066 = vpack.c.b16 %v1051, %v1050
  %v1067 = vpack.c.b16 %v1053, %v1052
  %v1068 = vpack.c.b16 %v1055, %v1054
  %v1069 = vpack.c.b16 %v1057, %v1056
  %v1070 = vpack.c.b16 %v1059, %v1058
  %v1071 = vpack.c.b16 %v1061, %v1060
  %v1072 = vpack.c.b16 %v1063, %v1062
  %v1073 = vpack.c.b16 %v1065, %v1064
  %1082 = vmatprep.subr.bf16.mxu0 0
  %1083 = vmatpush1.bf16.msra.mxu0 %v1066
  %1084 = vmatprep.subr.bf16.mxu0 0
  %1085 = vmatpush1.bf16.msra.mxu0 %v1067
  %1086 = vmatprep.subr.bf16.mxu0 0
  %1087 = vmatpush1.bf16.msra.mxu0 %v1068
  %1088 = vmatprep.subr.bf16.mxu0 0
  %1089 = vmatpush1.bf16.msra.mxu0 %v1069
  %1090 = vmatprep.subr.bf16.mxu0 0
  %1091 = vmatpush1.bf16.msra.mxu0 %v1070
  %1092 = vmatprep.subr.bf16.mxu0 0
  %1093 = vmatpush1.bf16.msra.mxu0 %v1071
  %1094 = vmatprep.subr.bf16.mxu0 0
  %1095 = vmatpush1.bf16.msra.mxu0 %v1072
  %1096 = vmatprep.subr.bf16.mxu0 0
  %1097 = vmatpush1.bf16.msra.mxu0 %v1073
  %1098 = vmatprep.subr.bf16.mxu0 0
  %1099 = vmatpush1.bf16.msra.mxu0 0
  %1100 = vmatprep.subr.bf16.mxu0 0
  %1101 = vmatpush1.bf16.msra.mxu0 0
  %1102 = vmatprep.subr.bf16.mxu0 0
  %1103 = vmatpush1.bf16.msra.mxu0 0
  %1104 = vmatprep.subr.bf16.mxu0 0
  %1105 = vmatpush1.bf16.msra.mxu0 0
  %1106 = vmatprep.subr.bf16.mxu0 0
  %1107 = vmatpush1.bf16.msra.mxu0 0
  %1108 = vmatprep.subr.bf16.mxu0 0
  %1109 = vmatpush1.bf16.msra.mxu0 0
  %1110 = vmatprep.subr.bf16.mxu0 0
  %1111 = vmatpush1.bf16.msra.mxu0 0
  %1112 = vmatprep.subr.bf16.mxu0 0
  %1113 = vmatpush1.bf16.msra.mxu0 0
  %1114 = vmatprep.mubr.bf16.mxu0 0
  %1115 = vmatmul.mubr.bf16.gmra.mrb[0].mxu0 %v1015
  %v1116 = vpop.f32.mrb[0].mxu0
  %v1117 = vadd.f32 0.0, %v1116
  %v1118 = vpop.f32.mrb[0].mxu0
  %v1119 = vpop.f32.mrb[0].mxu0
  %v1120 = vadd.f32 0.0, %v1119
  %v1121 = vpop.f32.mrb[0].mxu0
  %1122 = vmatprep.mubr.bf16.mxu0 0
  %1123 = vmatmul.mubr.bf16.gmra.mrb[0].mxu0 %v1016
  %v1124 = vpop.f32.mrb[0].mxu0
  %v1125 = vadd.f32 0.0, %v1124
  %v1126 = vpop.f32.mrb[0].mxu0
  %v1127 = vpop.f32.mrb[0].mxu0
  %v1128 = vadd.f32 0.0, %v1127
  %v1129 = vpop.f32.mrb[0].mxu0
  %1130 = vdwg.mxu0
  %v1131 = vadd.f32 %v997, %v1117
  %v1132 = vadd.f32 %v1000, %v1120
  %v1133 = vadd.f32 %v1005, %v1125
  %v1134 = vadd.f32 %v1008, %v1128
  %v1135 = vadd.f32 %v1131, %v1132
  %v1136 = vadd.f32 %v1135, %v1133
  %v1137 = vadd.f32 %v1136, %v1134
  %v1138 = vrot.slane %v1137, 4
  %v1139 = vadd.f32 %v1137, %v1138
  %v1140 = vrot.slane %v1139, 2
  %v1141 = vadd.f32 %v1139, %v1140
  %v1142 = vrot.slane %v1141, 1
  %v1143 = vadd.f32 %v1141, %v1142
  %1144 = vmatprep.subr.mxu0 0.0
  %1145 = vmatpush1.msra.mxu0 %v46
  %1146 = vmatprep.subr.mxu0 0.0
  %1147 = vmatpush1.msra.mxu0 %v47
  %1148 = vmatprep.subr.mxu0 0.0
  %1149 = vmatpush1.msra.mxu0 %v48
  %1150 = vmatprep.subr.mxu0 0.0
  %1151 = vmatpush1.msra.mxu0 %v49
  %1152 = vmatprep.subr.mxu0 0.0
  %1153 = vmatpush1.msra.mxu0 %v50
  %1154 = vmatprep.subr.mxu0 0.0
  %1155 = vmatpush1.msra.mxu0 %v51
  %1156 = vmatprep.subr.mxu0 0.0
  %1157 = vmatpush1.msra.mxu0 %v52
  %1158 = vmatprep.subr.mxu0 0.0
  %1159 = vmatpush1.msra.mxu0 %v53
  %1160 = vmatprep.subr.mxu0 0.0
  %1161 = vmatpush1.msra.mxu0 %v54
  %1162 = vmatprep.subr.mxu0 0.0
  %1163 = vmatpush1.msra.mxu0 %v55
  %1164 = vmatprep.subr.mxu0 0.0
  %1165 = vmatpush1.msra.mxu0 %v56
  %1166 = vmatprep.subr.mxu0 0.0
  %1167 = vmatpush1.msra.mxu0 %v57
  %1168 = vmatprep.subr.mxu0 0.0
  %1169 = vmatpush1.msra.mxu0 %v58
  %1170 = vmatprep.subr.mxu0 0.0
  %1171 = vmatpush1.msra.mxu0 %v59
  %1172 = vmatprep.subr.mxu0 0.0
  %1173 = vmatpush1.msra.mxu0 %v60
  %1174 = vmatprep.subr.mxu0 0.0
  %1175 = vmatpush1.msra.mxu0 %v61
  %1176 = vmatprep.subr.mxu0 0.0
  %1177 = vmatpush1.msra.mxu0 0.0
  %1178 = vmatprep.subr.mxu0 0.0
  %1179 = vmatpush1.msra.mxu0 0.0
  %1180 = vmatprep.subr.mxu0 0.0
  %1181 = vmatpush1.msra.mxu0 0.0
  %1182 = vmatprep.subr.mxu0 0.0
  %1183 = vmatpush1.msra.mxu0 0.0
  %1184 = vmatprep.subr.mxu0 0.0
  %1185 = vmatpush1.msra.mxu0 0.0
  %1186 = vmatprep.subr.mxu0 0.0
  %1187 = vmatpush1.msra.mxu0 0.0
  %1188 = vmatprep.subr.mxu0 0.0
  %1189 = vmatpush1.msra.mxu0 0.0
  %1190 = vmatprep.subr.mxu0 0.0
  %1191 = vmatpush1.msra.mxu0 0.0
  %1192 = vmatprep.subr.mxu0 0.0
  %1193 = vmatpush1.msra.mxu0 0.0
  %1194 = vmatprep.subr.mxu0 0.0
  %1195 = vmatpush1.msra.mxu0 0.0
  %1196 = vmatprep.subr.mxu0 0.0
  %1197 = vmatpush1.msra.mxu0 0.0
  %1198 = vmatprep.subr.mxu0 0.0
  %1199 = vmatpush1.msra.mxu0 0.0
  %1200 = vmatprep.subr.mxu0 0.0
  %1201 = vmatpush1.msra.mxu0 0.0
  %1202 = vmatprep.subr.mxu0 0.0
  %1203 = vmatpush1.msra.mxu0 0.0
  %1204 = vmatprep.subr.mxu0 0.0
  %1205 = vmatpush1.msra.mxu0 0.0
  %1206 = vmatprep.subr.mxu0 0.0
  %1207 = vmatpush1.msra.mxu0 0.0
  %1208 = vmatprep.mubr.f32.mxu0 0.0
  %1209 = vmatmul.mubr.f32.gmra.mrb[0].mxu0 %v1143
  %v1210 = vpop.f32.mrb[0].mxu0
  %v1211 = vadd.f32 0.0, %v1210
  %v1212 = vpop.f32.mrb[0].mxu0
  %1213 = vdwg.mxu0
  %v1214 = vmul.f32 %v1211, 0.001953125
  %v1216 = vsel %vm500, %v1214, 0
  %1218 = vmatprep.subr.mxu0 0.0
  %1219 = vmatpush1.msra.mxu0 %v45
  %1220 = vmatprep.subr.mxu0 0.0
  %1221 = vmatpush1.msra.mxu0 0.0
  %1222 = vmatprep.subr.mxu0 0.0
  %1223 = vmatpush1.msra.mxu0 0.0
  %1224 = vmatprep.subr.mxu0 0.0
  %1225 = vmatpush1.msra.mxu0 0.0
  %1226 = vmatprep.subr.mxu0 0.0
  %1227 = vmatpush1.msra.mxu0 0.0
  %1228 = vmatprep.subr.mxu0 0.0
  %1229 = vmatpush1.msra.mxu0 0.0
  %1230 = vmatprep.subr.mxu0 0.0
  %1231 = vmatpush1.msra.mxu0 0.0
  %1232 = vmatprep.subr.mxu0 0.0
  %1233 = vmatpush1.msra.mxu0 0.0
  %1234 = vmatprep.subr.mxu0 0.0
  %1235 = vmatpush1.msra.mxu0 0.0
  %1236 = vmatprep.subr.mxu0 0.0
  %1237 = vmatpush1.msra.mxu0 0.0
  %1238 = vmatprep.subr.mxu0 0.0
  %1239 = vmatpush1.msra.mxu0 0.0
  %1240 = vmatprep.subr.mxu0 0.0
  %1241 = vmatpush1.msra.mxu0 0.0
  %1242 = vmatprep.subr.mxu0 0.0
  %1243 = vmatpush1.msra.mxu0 0.0
  %1244 = vmatprep.subr.mxu0 0.0
  %1245 = vmatpush1.msra.mxu0 0.0
  %1246 = vmatprep.subr.mxu0 0.0
  %1247 = vmatpush1.msra.mxu0 0.0
  %1248 = vmatprep.subr.mxu0 0.0
  %1249 = vmatpush1.msra.mxu0 0.0
  %1250 = vmatprep.subr.mxu0 0.0
  %1251 = vmatpush1.msra.mxu0 0.0
  %1252 = vmatprep.subr.mxu0 0.0
  %1253 = vmatpush1.msra.mxu0 0.0
  %1254 = vmatprep.subr.mxu0 0.0
  %1255 = vmatpush1.msra.mxu0 0.0
  %1256 = vmatprep.subr.mxu0 0.0
  %1257 = vmatpush1.msra.mxu0 0.0
  %1258 = vmatprep.subr.mxu0 0.0
  %1259 = vmatpush1.msra.mxu0 0.0
  %1260 = vmatprep.subr.mxu0 0.0
  %1261 = vmatpush1.msra.mxu0 0.0
  %1262 = vmatprep.subr.mxu0 0.0
  %1263 = vmatpush1.msra.mxu0 0.0
  %1264 = vmatprep.subr.mxu0 0.0
  %1265 = vmatpush1.msra.mxu0 0.0
  %1266 = vmatprep.subr.mxu0 0.0
  %1267 = vmatpush1.msra.mxu0 0.0
  %1268 = vmatprep.subr.mxu0 0.0
  %1269 = vmatpush1.msra.mxu0 0.0
  %1270 = vmatprep.subr.mxu0 0.0
  %1271 = vmatpush1.msra.mxu0 0.0
  %1272 = vmatprep.subr.mxu0 0.0
  %1273 = vmatpush1.msra.mxu0 0.0
  %1274 = vmatprep.subr.mxu0 0.0
  %1275 = vmatpush1.msra.mxu0 0.0
  %1276 = vmatprep.subr.mxu0 0.0
  %1277 = vmatpush1.msra.mxu0 0.0
  %1278 = vmatprep.subr.mxu0 0.0
  %1279 = vmatpush1.msra.mxu0 0.0
  %1280 = vmatprep.subr.mxu0 0.0
  %1281 = vmatpush1.msra.mxu0 0.0
  %1282 = vmatprep.mubr.f32.mxu0 0.0
  %1283 = vmatmul.mubr.f32.gmra.mrb[0].mxu0 %v1216
  %v1284 = vpop.f32.mrb[0].mxu0
  %v1285 = vadd.f32 0.0, %v1284
  %v1286 = vpop.f32.mrb[0].mxu0
  %1287 = vdwg.mxu0
  %v1288 = vlaneseq
  %v1289 = vshrl.u32 %v1288, 7
  %v1290 = vsub.s32 0, %v1289
  %v1291 = vrot.slane %v1285, %v1290
  %v1292 = vsub.f32 %v1131, %v1291
  %v1293 = vsub.f32 %v1132, %v1291
  %v1294 = vsub.f32 %v1133, %v1291
  %v1295 = vsub.f32 %v1134, %v1291
  %v1296 = vmul.f32 %v1292, %v1292
  %v1297 = vmul.f32 %v1293, %v1293
  %v1298 = vmul.f32 %v1294, %v1294
  %v1299 = vmul.f32 %v1295, %v1295
  %v1300 = vadd.f32 %v1296, %v1297
  %v1301 = vadd.f32 %v1300, %v1298
  %v1302 = vadd.f32 %v1301, %v1299
  %v1303 = vrot.slane %v1302, 4
  %v1304 = vadd.f32 %v1302, %v1303
  %v1305 = vrot.slane %v1304, 2
  %v1306 = vadd.f32 %v1304, %v1305
  %v1307 = vrot.slane %v1306, 1
  %v1308 = vadd.f32 %v1306, %v1307
  %1309 = vmatprep.subr.mxu0 0.0
  %1310 = vmatpush1.msra.mxu0 %v46
  %1311 = vmatprep.subr.mxu0 0.0
  %1312 = vmatpush1.msra.mxu0 %v47
  %1313 = vmatprep.subr.mxu0 0.0
  %1314 = vmatpush1.msra.mxu0 %v48
  %1315 = vmatprep.subr.mxu0 0.0
  %1316 = vmatpush1.msra.mxu0 %v49
  %1317 = vmatprep.subr.mxu0 0.0
  %1318 = vmatpush1.msra.mxu0 %v50
  %1319 = vmatprep.subr.mxu0 0.0
  %1320 = vmatpush1.msra.mxu0 %v51
  %1321 = vmatprep.subr.mxu0 0.0
  %1322 = vmatpush1.msra.mxu0 %v52
  %1323 = vmatprep.subr.mxu0 0.0
  %1324 = vmatpush1.msra.mxu0 %v53
  %1325 = vmatprep.subr.mxu0 0.0
  %1326 = vmatpush1.msra.mxu0 %v54
  %1327 = vmatprep.subr.mxu0 0.0
  %1328 = vmatpush1.msra.mxu0 %v55
  %1329 = vmatprep.subr.mxu0 0.0
  %1330 = vmatpush1.msra.mxu0 %v56
  %1331 = vmatprep.subr.mxu0 0.0
  %1332 = vmatpush1.msra.mxu0 %v57
  %1333 = vmatprep.subr.mxu0 0.0
  %1334 = vmatpush1.msra.mxu0 %v58
  %1335 = vmatprep.subr.mxu0 0.0
  %1336 = vmatpush1.msra.mxu0 %v59
  %1337 = vmatprep.subr.mxu0 0.0
  %1338 = vmatpush1.msra.mxu0 %v60
  %1339 = vmatprep.subr.mxu0 0.0
  %1340 = vmatpush1.msra.mxu0 %v61
  %1341 = vmatprep.subr.mxu0 0.0
  %1342 = vmatpush1.msra.mxu0 0.0
  %1343 = vmatprep.subr.mxu0 0.0
  %1344 = vmatpush1.msra.mxu0 0.0
  %1345 = vmatprep.subr.mxu0 0.0
  %1346 = vmatpush1.msra.mxu0 0.0
  %1347 = vmatprep.subr.mxu0 0.0
  %1348 = vmatpush1.msra.mxu0 0.0
  %1349 = vmatprep.subr.mxu0 0.0
  %1350 = vmatpush1.msra.mxu0 0.0
  %1351 = vmatprep.subr.mxu0 0.0
  %1352 = vmatpush1.msra.mxu0 0.0
  %1353 = vmatprep.subr.mxu0 0.0
  %1354 = vmatpush1.msra.mxu0 0.0
  %1355 = vmatprep.subr.mxu0 0.0
  %1356 = vmatpush1.msra.mxu0 0.0
  %1357 = vmatprep.subr.mxu0 0.0
  %1358 = vmatpush1.msra.mxu0 0.0
  %1359 = vmatprep.subr.mxu0 0.0
  %1360 = vmatpush1.msra.mxu0 0.0
  %1361 = vmatprep.subr.mxu0 0.0
  %1362 = vmatpush1.msra.mxu0 0.0
  %1363 = vmatprep.subr.mxu0 0.0
  %1364 = vmatpush1.msra.mxu0 0.0
  %1365 = vmatprep.subr.mxu0 0.0
  %1366 = vmatpush1.msra.mxu0 0.0
  %1367 = vmatprep.subr.mxu0 0.0
  %1368 = vmatpush1.msra.mxu0 0.0
  %1369 = vmatprep.subr.mxu0 0.0
  %1370 = vmatpush1.msra.mxu0 0.0
  %1371 = vmatprep.subr.mxu0 0.0
  %1372 = vmatpush1.msra.mxu0 0.0
  %1373 = vmatprep.mubr.f32.mxu0 0.0
  %1374 = vmatmul.mubr.f32.gmra.mrb[0].mxu0 %v1308
  %v1375 = vpop.f32.mrb[0].mxu0
  %v1376 = vadd.f32 0.0, %v1375
  %v1377 = vpop.f32.mrb[0].mxu0
  %1378 = vdwg.mxu0
  %v1379 = vmul.f32 %v1376, 0.001953125
  %v1380 = vld [vmem:[%s3 + $0x1] sm:$0x1]
  %v1381 = vadd.f32 %v1379, 1e-05
  %v1382 = vrsqrt.pop %v1381
  %v1383 = vmul.f32 %v1380, %v1382
  %v1385 = vsel %vm500, %v1383, 0
  %1387 = vmatprep.subr.mxu0 0.0
  %1388 = vmatpush1.msra.mxu0 %v45
  %1389 = vmatprep.subr.mxu0 0.0
  %1390 = vmatpush1.msra.mxu0 0.0
  %1391 = vmatprep.subr.mxu0 0.0
  %1392 = vmatpush1.msra.mxu0 0.0
  %1393 = vmatprep.subr.mxu0 0.0
  %1394 = vmatpush1.msra.mxu0 0.0
  %1395 = vmatprep.subr.mxu0 0.0
  %1396 = vmatpush1.msra.mxu0 0.0
  %1397 = vmatprep.subr.mxu0 0.0
  %1398 = vmatpush1.msra.mxu0 0.0
  %1399 = vmatprep.subr.mxu0 0.0
  %1400 = vmatpush1.msra.mxu0 0.0
  %1401 = vmatprep.subr.mxu0 0.0
  %1402 = vmatpush1.msra.mxu0 0.0
  %1403 = vmatprep.subr.mxu0 0.0
  %1404 = vmatpush1.msra.mxu0 0.0
  %1405 = vmatprep.subr.mxu0 0.0
  %1406 = vmatpush1.msra.mxu0 0.0
  %1407 = vmatprep.subr.mxu0 0.0
  %1408 = vmatpush1.msra.mxu0 0.0
  %1409 = vmatprep.subr.mxu0 0.0
  %1410 = vmatpush1.msra.mxu0 0.0
  %1411 = vmatprep.subr.mxu0 0.0
  %1412 = vmatpush1.msra.mxu0 0.0
  %1413 = vmatprep.subr.mxu0 0.0
  %1414 = vmatpush1.msra.mxu0 0.0
  %1415 = vmatprep.subr.mxu0 0.0
  %1416 = vmatpush1.msra.mxu0 0.0
  %1417 = vmatprep.subr.mxu0 0.0
  %1418 = vmatpush1.msra.mxu0 0.0
  %1419 = vmatprep.subr.mxu0 0.0
  %1420 = vmatpush1.msra.mxu0 0.0
  %1421 = vmatprep.subr.mxu0 0.0
  %1422 = vmatpush1.msra.mxu0 0.0
  %1423 = vmatprep.subr.mxu0 0.0
  %1424 = vmatpush1.msra.mxu0 0.0
  %1425 = vmatprep.subr.mxu0 0.0
  %1426 = vmatpush1.msra.mxu0 0.0
  %1427 = vmatprep.subr.mxu0 0.0
  %1428 = vmatpush1.msra.mxu0 0.0
  %1429 = vmatprep.subr.mxu0 0.0
  %1430 = vmatpush1.msra.mxu0 0.0
  %1431 = vmatprep.subr.mxu0 0.0
  %1432 = vmatpush1.msra.mxu0 0.0
  %1433 = vmatprep.subr.mxu0 0.0
  %1434 = vmatpush1.msra.mxu0 0.0
  %1435 = vmatprep.subr.mxu0 0.0
  %1436 = vmatpush1.msra.mxu0 0.0
  %1437 = vmatprep.subr.mxu0 0.0
  %1438 = vmatpush1.msra.mxu0 0.0
  %1439 = vmatprep.subr.mxu0 0.0
  %1440 = vmatpush1.msra.mxu0 0.0
  %1441 = vmatprep.subr.mxu0 0.0
  %1442 = vmatpush1.msra.mxu0 0.0
  %1443 = vmatprep.subr.mxu0 0.0
  %1444 = vmatpush1.msra.mxu0 0.0
  %1445 = vmatprep.subr.mxu0 0.0
  %1446 = vmatpush1.msra.mxu0 0.0
  %1447 = vmatprep.subr.mxu0 0.0
  %1448 = vmatpush1.msra.mxu0 0.0
  %1449 = vmatprep.subr.mxu0 0.0
  %1450 = vmatpush1.msra.mxu0 0.0
  %1451 = vmatprep.mubr.f32.mxu0 0.0
  %1452 = vmatmul.mubr.f32.gmra.mrb[0].mxu0 %v1385
  %v1453 = vpop.f32.mrb[0].mxu0
  %v1454 = vadd.f32 0.0, %v1453
  %v1455 = vpop.f32.mrb[0].mxu0
  %1456 = vdwg.mxu0
  %v1457 = vlaneseq
  %v1458 = vshrl.u32 %v1457, 7
  %v1459 = vsub.s32 0, %v1458
  %v1460 = vrot.slane %v1454, %v1459
  %v1461 = vmul.f32 %v1292, %v1460
  %v1462 = vmul.f32 %v1293, %v1460
  %v1463 = vmul.f32 %v1294, %v1460
  %v1464 = vmul.f32 %v1295, %v1460
  %v1465 = vld [vmem:[%s4 + $0x2] sm:$0x1]
  %v1466 = vlaneseq
  %v1467 = vshrl.u32 %v1466, 7
  %v1468 = vsub.s32 0, %v1467
  %v1469 = vrot.slane %v1465, %v1468
  %v1470 = vadd.f32 %v1461, %v1469
  %v1471 = vadd.f32 %v1462, %v1469
  %v1472 = vadd.f32 %v1463, %v1469
  %v1473 = vadd.f32 %v1464, %v1469
  %v1474 = vadd.f32 %v1470, %v416
  %v1475 = vadd.f32 %v1471, %v417
  %v1476 = vadd.f32 %v1472, %v418
  %v1477 = vadd.f32 %v1473, %v419
  %v1478 = vmax.f32 %v1474, 0.0
  %v1479 = vmax.f32 %v1475, 0.0
  %v1480 = vmax.f32 %v1476, 0.0
  %v1481 = vmax.f32 %v1477, 0.0
  %1482 = vst [vmem:[%s7] sm:$0xff] %v1478
  %1483 = vst [vmem:[%s7 + $0x8] sm:$0xff] %v1479
  %1484 = vst [vmem:[%s7 + $0x10] sm:$0xff] %v1480
  %1485 = vst [vmem:[%s7 + $0x18] sm:$0xff] %v1481
  // Predicated region
  $region30: #{common_block_forward.1} parent=0 // pred_check
    _
  $region31: #{common_block_forward.1} parent=0 // pred_check_branch
    %1487 = sbr.rel (0) target = $region33
  $region32: #{common_block_forward.1} parent=0 // pred_region
    _
  $region33: #{common_block_forward.1} parent=0 // pred_fallthru
    _
  // Predicated region
  $region34: #{common_block_forward.1} parent=0 // pred_check
    _
  $region35: #{common_block_forward.1} parent=0 // pred_check_branch
    %1489 = sbr.rel (0) target = $region37
  $region36: #{common_block_forward.1} parent=0 // pred_region
    _
  $region37: #{common_block_forward.1} parent=0 // pred_fallthru
    _

</llo_original>
